<compile_context>
chip_gen: v7x
topology: tpu7x:2x2x1
jax: 0.10.0
libtpu: 0.0.40
codegen_flags: <defaults>
</compile_context>

<pallas_src>
import functools
import math

import jax
import jax.numpy as jnp
from jax.experimental import pallas as pl
from jax.experimental.pallas import tpu as pltpu


# ----------------------------------------------------------------------------
# Pallas kernel: one batch element of the full SAB block per grid step.
# ----------------------------------------------------------------------------
def _make_sab_kernel(num_heads: int, dim: int, seq: int, eps: float = 1e-5):
    H, D, S = num_heads, dim, seq
    hd = D // H

    def _layer_norm(x, gamma, beta):
        mu = jnp.mean(x, axis=-1, keepdims=True)
        var = jnp.mean((x - mu) ** 2, axis=-1, keepdims=True)
        return (x - mu) * jax.lax.rsqrt(var + eps) * gamma + beta

    def kernel(x_ref, wqkv_ref, bqkv_ref, wo_ref, bo_ref,
               g1_ref, be1_ref, w1_ref, b1_ref, w2_ref, b2_ref,
               g2_ref, be2_ref, o_ref):
        x = x_ref[0]                                                   # (S, D)

        # ---- QKV projections: three full-width dots, leading-axis weight indexing.
        # 1/sqrt(hd) is already folded into wqkv[0] / bqkv[0] on the host.
        q = jnp.dot(x, wqkv_ref[0], preferred_element_type=jnp.float32) + bqkv_ref[0]
        k = jnp.dot(x, wqkv_ref[1], preferred_element_type=jnp.float32) + bqkv_ref[1]
        v = jnp.dot(x, wqkv_ref[2], preferred_element_type=jnp.float32) + bqkv_ref[2]

        # ---- split heads: (S, D) -> (H, S, hd)
        qh = jnp.transpose(q.reshape(S, H, hd), (1, 0, 2))
        kh = jnp.transpose(k.reshape(S, H, hd), (1, 0, 2))
        vh = jnp.transpose(v.reshape(S, H, hd), (1, 0, 2))

        # ---- scaled-dot-product attention (one batch per step => no mask needed)
        s = jnp.einsum("hqd,hkd->hqk", qh, kh,
                       preferred_element_type=jnp.float32)             # (H, S, S)
        s = s - jnp.max(s, axis=-1, keepdims=True)
        p = jnp.exp(s)
        p = p * pl.reciprocal(jnp.sum(p, axis=-1, keepdims=True), approx=False)
        a = jnp.einsum("hqk,hkd->hqd", p, vh,
                       preferred_element_type=jnp.float32)             # (H, S, hd)

        # ---- concat heads along lanes, single output-projection matmul
        a = jnp.transpose(a, (1, 0, 2)).reshape(S, D)                  # (S, D)
        attn = jnp.dot(a, wo_ref[...], preferred_element_type=jnp.float32) + bo_ref[...]

        # ---- residual + LayerNorm 1
        y1 = _layer_norm(x + attn, g1_ref[...], be1_ref[...])

        # ---- feed-forward: Linear -> ReLU -> Linear (weights pre-transposed)
        h = jnp.maximum(
            jnp.dot(y1, w1_ref[...], preferred_element_type=jnp.float32) + b1_ref[...],
            0.0)
        ff = jnp.dot(h, w2_ref[...], preferred_element_type=jnp.float32) + b2_ref[...]

        # ---- residual + LayerNorm 2
        o_ref[0] = _layer_norm(y1 + ff, g2_ref[...], be2_ref[...])

    return kernel


# ----------------------------------------------------------------------------
# One-time host-side weight packing (hoisted out of the forward path).
# ----------------------------------------------------------------------------
def pack_sab_params(params, num_heads):
    D = params["wq"].shape[0]
    assert D % num_heads == 0, "dim must be divisible by num_heads"
    hd = D // num_heads
    scale = 1.0 / math.sqrt(hd)
    f32 = jnp.float32
    row = lambda p: jnp.asarray(p, f32).reshape(1, -1)

    # (3, D, D): pre-transposed [wq * scale, wk, wv] on a leading (sublane-major) axis.
    wqkv = jnp.stack([
        jnp.asarray(params["wq"], f32).T * scale,
        jnp.asarray(params["wk"], f32).T,
        jnp.asarray(params["wv"], f32).T,
    ], axis=0)
    bqkv = jnp.stack([row(params["bq"]) * scale, row(params["bk"]), row(params["bv"])],
                     axis=0)                                            # (3, 1, D)

    return {
        "wqkv": wqkv, "bqkv": bqkv,
        "wo": jnp.asarray(params["wo"], f32).T, "bo": row(params["bo"]),
        "ln1_g": row(params["ln1_g"]), "ln1_b": row(params["ln1_b"]),
        "w1": jnp.asarray(params["w1"], f32).T, "b1": row(params["b1"]),
        "w2": jnp.asarray(params["w2"], f32).T, "b2": row(params["b2"]),
        "ln2_g": row(params["ln2_g"]), "ln2_b": row(params["ln2_b"]),
    }


# ----------------------------------------------------------------------------
# Jitted forward: layout transpose + pallas_call (grid over batch, "parallel").
# ----------------------------------------------------------------------------
@functools.partial(jax.jit, static_argnames="num_heads")
def sab_forward(X_sbd, packed, num_heads):
    """X_sbd: (S, B, D) float32, matching PyTorch nn.MultiheadAttention layout."""
    S, B, D = X_sbd.shape
    f32 = jnp.float32
    x_bsd = jnp.transpose(X_sbd, (1, 0, 2)).astype(f32)                 # (B, S, D)

    kernel = _make_sab_kernel(num_heads, D, S)

    def full(shape):
        return pl.BlockSpec(shape, lambda b: (0,) * len(shape))

    in_specs = [
        pl.BlockSpec((1, S, D), lambda b: (b, 0, 0)),   # x: one batch element per step
        full((3, D, D)), full((3, 1, D)),               # wqkv, bqkv
        full((D, D)), full((1, D)),                     # wo, bo
        full((1, D)), full((1, D)),                     # ln1 gamma/beta
        full((D, D)), full((1, D)),                     # w1, b1
        full((D, D)), full((1, D)),                     # w2, b2
        full((1, D)), full((1, D)),                     # ln2 gamma/beta
    ]

    out_bsd = pl.pallas_call(
        kernel,
        out_shape=jax.ShapeDtypeStruct((B, S, D), f32),
        grid=(B,),
        in_specs=in_specs,
        out_specs=pl.BlockSpec((1, S, D), lambda b: (b, 0, 0)),
        compiler_params=pltpu.CompilerParams(dimension_semantics=("parallel",)),
    )(x_bsd, packed["wqkv"], packed["bqkv"], packed["wo"], packed["bo"],
      packed["ln1_g"], packed["ln1_b"], packed["w1"], packed["b1"],
      packed["w2"], packed["b2"], packed["ln2_g"], packed["ln2_b"])

    return jnp.transpose(out_bsd, (1, 0, 2))                            # (S, B, D)


# ----------------------------------------------------------------------------
# Pure-JAX reference (sanity check of the kernel)
# ----------------------------------------------------------------------------
def sab_reference(X_sbd, params, num_heads, eps=1e-5):
    S, B, D = X_sbd.shape
    hd = D // num_heads
    x = jnp.transpose(X_sbd, (1, 0, 2))                # (B, S, D)

    def ln(v, g, b):
        mu = jnp.mean(v, axis=-1, keepdims=True)
        var = jnp.mean((v - mu) ** 2, axis=-1, keepdims=True)
        return (v - mu) / jnp.sqrt(var + eps) * g + b

    q = x @ params["wq"].T + params["bq"]
    k = x @ params["wk"].T + params["bk"]
    v = x @ params["wv"].T + params["bv"]
    q = q.reshape(B, S, num_heads, hd).transpose(0, 2, 1, 3)
    k = k.reshape(B, S, num_heads, hd).transpose(0, 2, 1, 3)
    v = v.reshape(B, S, num_heads, hd).transpose(0, 2, 1, 3)
    s = jnp.einsum("bhqd,bhkd->bhqk", q, k) / math.sqrt(hd)
    p = jax.nn.softmax(s, axis=-1)
    a = jnp.einsum("bhqk,bhkd->bhqd", p, v).transpose(0, 2, 1, 3).reshape(B, S, D)
    a = a @ params["wo"].T + params["bo"]
    y1 = ln(x + a, params["ln1_g"], params["ln1_b"])
    ff = jnp.maximum(y1 @ params["w1"].T + params["b1"], 0.0) @ params["w2"].T + params["b2"]
    y2 = ln(y1 + ff, params["ln2_g"], params["ln2_b"])
    return jnp.transpose(y2, (1, 0, 2))


# ----------------------------------------------------------------------------
# Main
# ----------------------------------------------------------------------------
if __name__ == "__main__":
    SEQ, BATCH, DIM, HEADS = 8, 2, 32, 4

    key = jax.random.PRNGKey(0)
    keys = jax.random.split(key, 16)

    def w(k, shape, scale=0.1):
        return jax.random.normal(k, shape, dtype=jnp.float32) * scale

    params = {
        "wq": w(keys[0], (DIM, DIM)), "bq": w(keys[1], (DIM,), 0.01),
        "wk": w(keys[2], (DIM, DIM)), "bk": w(keys[3], (DIM,), 0.01),
        "wv": w(keys[4], (DIM, DIM)), "bv": w(keys[5], (DIM,), 0.01),
        "wo": w(keys[6], (DIM, DIM)), "bo": w(keys[7], (DIM,), 0.01),
        "ln1_g": jnp.ones((DIM,), jnp.float32), "ln1_b": jnp.zeros((DIM,), jnp.float32),
        "w1": w(keys[8], (DIM, DIM)), "b1": w(keys[9], (DIM,), 0.01),
        "w2": w(keys[10], (DIM, DIM)), "b2": w(keys[11], (DIM,), 0.01),
        "ln2_g": jnp.ones((DIM,), jnp.float32), "ln2_b": jnp.zeros((DIM,), jnp.float32),
    }

    X = jax.random.normal(keys[12], (SEQ, BATCH, DIM), dtype=jnp.float32)

    packed = pack_sab_params(params, HEADS)      # one-time packing, outside the forward

    out = sab_forward(X, packed, HEADS)
    out = jax.block_until_ready(out)

    ref = sab_reference(X, params, HEADS)
    assert out.shape == (SEQ, BATCH, DIM)
    assert jnp.max(jnp.abs(out - ref)) < 1e-4, "kernel mismatch vs reference"

    print("KERNEL_OK")
</pallas_src>

<mosaic_0001>
module attributes {stable_mosaic.version = 11 : i64} {
  func.func @kernel(%arg0: i32, %arg1: memref<1x8x32xf32, #tpu.memory_space<vmem>>, %arg2: memref<3x32x32xf32, #tpu.memory_space<vmem>>, %arg3: memref<3x1x32xf32, #tpu.memory_space<vmem>>, %arg4: memref<32x32xf32, #tpu.memory_space<vmem>>, %arg5: memref<1x32xf32, #tpu.memory_space<vmem>>, %arg6: memref<1x32xf32, #tpu.memory_space<vmem>>, %arg7: memref<1x32xf32, #tpu.memory_space<vmem>>, %arg8: memref<32x32xf32, #tpu.memory_space<vmem>>, %arg9: memref<1x32xf32, #tpu.memory_space<vmem>>, %arg10: memref<32x32xf32, #tpu.memory_space<vmem>>, %arg11: memref<1x32xf32, #tpu.memory_space<vmem>>, %arg12: memref<1x32xf32, #tpu.memory_space<vmem>>, %arg13: memref<1x32xf32, #tpu.memory_space<vmem>>, %arg14: memref<1x8x32xf32, #tpu.memory_space<vmem>>) attributes {dimension_semantics = [#tpu.dimension_semantics<parallel>], iteration_bounds = array<i64: 2>, scalar_prefetch = 0 : i64, scratch_operands = 0 : i64, tpu.core_type = #tpu.core_type<tc>, window_params = [{transform_indices = @transform_0, window_bounds = array<i64: 1, 8, 32>}, {pipeline_mode = #tpu.pipeline_mode<synchronous>, transform_indices = @transform_1, window_bounds = array<i64: 3, 32, 32>}, {pipeline_mode = #tpu.pipeline_mode<synchronous>, transform_indices = @transform_2, window_bounds = array<i64: 3, 1, 32>}, {pipeline_mode = #tpu.pipeline_mode<synchronous>, transform_indices = @transform_3, window_bounds = array<i64: 32, 32>}, {pipeline_mode = #tpu.pipeline_mode<synchronous>, transform_indices = @transform_4, window_bounds = array<i64: 1, 32>}, {pipeline_mode = #tpu.pipeline_mode<synchronous>, transform_indices = @transform_5, window_bounds = array<i64: 1, 32>}, {pipeline_mode = #tpu.pipeline_mode<synchronous>, transform_indices = @transform_6, window_bounds = array<i64: 1, 32>}, {pipeline_mode = #tpu.pipeline_mode<synchronous>, transform_indices = @transform_7, window_bounds = array<i64: 32, 32>}, {pipeline_mode = #tpu.pipeline_mode<synchronous>, transform_indices = @transform_8, window_bounds = array<i64: 1, 32>}, {pipeline_mode = #tpu.pipeline_mode<synchronous>, transform_indices = @transform_9, window_bounds = array<i64: 32, 32>}, {pipeline_mode = #tpu.pipeline_mode<synchronous>, transform_indices = @transform_10, window_bounds = array<i64: 1, 32>}, {pipeline_mode = #tpu.pipeline_mode<synchronous>, transform_indices = @transform_11, window_bounds = array<i64: 1, 32>}, {pipeline_mode = #tpu.pipeline_mode<synchronous>, transform_indices = @transform_12, window_bounds = array<i64: 1, 32>}, {transform_indices = @transform_13, window_bounds = array<i64: 1, 8, 32>}]} {
    %c0 = arith.constant 0 : index
    %c0_0 = arith.constant 0 : index
    %c0_1 = arith.constant 0 : index
    %0 = vector.load %arg1[%c0, %c0_0, %c0_1] : memref<1x8x32xf32, #tpu.memory_space<vmem>>, vector<1x8x32xf32>
    %1 = vector.shape_cast %0 : vector<1x8x32xf32> to vector<8x32xf32>
    %c0_2 = arith.constant 0 : index
    %c0_3 = arith.constant 0 : index
    %c0_4 = arith.constant 0 : index
    %2 = vector.load %arg2[%c0_2, %c0_3, %c0_4] : memref<3x32x32xf32, #tpu.memory_space<vmem>>, vector<1x32x32xf32>
    %3 = vector.shape_cast %2 : vector<1x32x32xf32> to vector<32x32xf32>
    %cst = arith.constant dense<0.000000e+00> : vector<8x32xf32>
    %4 = tpu.matmul %1, %3, %cst {dimension_numbers = #tpu.dot_dimension_numbers<[1], [0], [0], [1], [0, 0, 1, 1], [], []>} : vector<8x32xf32>, vector<32x32xf32>, vector<8x32xf32> -> vector<8x32xf32>
    %c0_5 = arith.constant 0 : index
    %c0_6 = arith.constant 0 : index
    %c0_7 = arith.constant 0 : index
    %5 = vector.load %arg3[%c0_5, %c0_6, %c0_7] : memref<3x1x32xf32, #tpu.memory_space<vmem>>, vector<1x1x32xf32>
    %6 = vector.shape_cast %5 : vector<1x1x32xf32> to vector<1x32xf32>
    %7 = vector.broadcast %6 : vector<1x32xf32> to vector<8x32xf32>
    %8 = arith.addf %4, %7 : vector<8x32xf32>
    %c1 = arith.constant 1 : index
    %c0_8 = arith.constant 0 : index
    %c0_9 = arith.constant 0 : index
    %9 = vector.load %arg2[%c1, %c0_8, %c0_9] : memref<3x32x32xf32, #tpu.memory_space<vmem>>, vector<1x32x32xf32>
    %10 = vector.shape_cast %9 : vector<1x32x32xf32> to vector<32x32xf32>
    %cst_10 = arith.constant dense<0.000000e+00> : vector<8x32xf32>
    %11 = tpu.matmul %1, %10, %cst_10 {dimension_numbers = #tpu.dot_dimension_numbers<[1], [0], [0], [1], [0, 0, 1, 1], [], []>} : vector<8x32xf32>, vector<32x32xf32>, vector<8x32xf32> -> vector<8x32xf32>
    %c1_11 = arith.constant 1 : index
    %c0_12 = arith.constant 0 : index
    %c0_13 = arith.constant 0 : index
    %12 = vector.load %arg3[%c1_11, %c0_12, %c0_13] : memref<3x1x32xf32, #tpu.memory_space<vmem>>, vector<1x1x32xf32>
    %13 = vector.shape_cast %12 : vector<1x1x32xf32> to vector<1x32xf32>
    %14 = vector.broadcast %13 : vector<1x32xf32> to vector<8x32xf32>
    %15 = arith.addf %11, %14 : vector<8x32xf32>
    %c2 = arith.constant 2 : index
    %c0_14 = arith.constant 0 : index
    %c0_15 = arith.constant 0 : index
    %16 = vector.load %arg2[%c2, %c0_14, %c0_15] : memref<3x32x32xf32, #tpu.memory_space<vmem>>, vector<1x32x32xf32>
    %17 = vector.shape_cast %16 : vector<1x32x32xf32> to vector<32x32xf32>
    %cst_16 = arith.constant dense<0.000000e+00> : vector<8x32xf32>
    %18 = tpu.matmul %1, %17, %cst_16 {dimension_numbers = #tpu.dot_dimension_numbers<[1], [0], [0], [1], [0, 0, 1, 1], [], []>} : vector<8x32xf32>, vector<32x32xf32>, vector<8x32xf32> -> vector<8x32xf32>
    %c2_17 = arith.constant 2 : index
    %c0_18 = arith.constant 0 : index
    %c0_19 = arith.constant 0 : index
    %19 = vector.load %arg3[%c2_17, %c0_18, %c0_19] : memref<3x1x32xf32, #tpu.memory_space<vmem>>, vector<1x1x32xf32>
    %20 = vector.shape_cast %19 : vector<1x1x32xf32> to vector<1x32xf32>
    %21 = vector.broadcast %20 : vector<1x32xf32> to vector<8x32xf32>
    %22 = arith.addf %18, %21 : vector<8x32xf32>
    %23 = vector.shape_cast %8 : vector<8x32xf32> to vector<8x4x8xf32>
    %24 = tpu.transpose %23, [1, 0, 2] : vector<8x4x8xf32> -> vector<4x8x8xf32>
    %25 = vector.shape_cast %15 : vector<8x32xf32> to vector<8x4x8xf32>
    %26 = tpu.transpose %25, [1, 0, 2] : vector<8x4x8xf32> -> vector<4x8x8xf32>
    %27 = vector.shape_cast %22 : vector<8x32xf32> to vector<8x4x8xf32>
    %28 = tpu.transpose %27, [1, 0, 2] : vector<8x4x8xf32> -> vector<4x8x8xf32>
    "tpu.trace_start"() <{level = 10 : i32, message = "hqd,hkd->hqk"}> : () -> ()
    %cst_20 = arith.constant dense<0.000000e+00> : vector<4x8x8xf32>
    %29 = tpu.matmul %24, %26, %cst_20 {dimension_numbers = #tpu.dot_dimension_numbers<[2], [2], [1], [1], [0, 0, 0, 1, 1, 1], [0], [0]>} : vector<4x8x8xf32>, vector<4x8x8xf32>, vector<4x8x8xf32> -> vector<4x8x8xf32>
    "tpu.trace_stop"() : () -> ()
    %cst_21 = arith.constant dense<0xFF800000> : vector<4x8xf32>
    %30 = vector.multi_reduction <maximumf>, %29, %cst_21 [2] : vector<4x8x8xf32> to vector<4x8xf32>
    %31 = vector.shape_cast %30 : vector<4x8xf32> to vector<4x8x1xf32>
    %32 = vector.broadcast %31 : vector<4x8x1xf32> to vector<4x8x8xf32>
    %33 = arith.subf %29, %32 : vector<4x8x8xf32>
    %34 = math.exp %33 : vector<4x8x8xf32>
    %cst_22 = arith.constant dense<0.000000e+00> : vector<4x8xf32>
    %35 = vector.multi_reduction <add>, %34, %cst_22 [2] : vector<4x8x8xf32> to vector<4x8xf32>
    %36 = vector.shape_cast %35 : vector<4x8xf32> to vector<4x8x1xf32>
    %37 = tpu.reciprocal %36 : vector<4x8x1xf32> -> vector<4x8x1xf32>
    %38 = vector.broadcast %37 : vector<4x8x1xf32> to vector<4x8x8xf32>
    %39 = arith.mulf %34, %38 : vector<4x8x8xf32>
    "tpu.trace_start"() <{level = 10 : i32, message = "hqk,hkd->hqd"}> : () -> ()
    %cst_23 = arith.constant dense<0.000000e+00> : vector<4x8x8xf32>
    %40 = tpu.matmul %39, %28, %cst_23 {dimension_numbers = #tpu.dot_dimension_numbers<[2], [1], [1], [2], [0, 0, 0, 1, 1, 2], [0], [0]>} : vector<4x8x8xf32>, vector<4x8x8xf32>, vector<4x8x8xf32> -> vector<4x8x8xf32>
    "tpu.trace_stop"() : () -> ()
    %41 = tpu.transpose %40, [1, 0, 2] : vector<4x8x8xf32> -> vector<8x4x8xf32>
    %42 = vector.shape_cast %41 : vector<8x4x8xf32> to vector<8x32xf32>
    %c0_24 = arith.constant 0 : index
    %c0_25 = arith.constant 0 : index
    %43 = vector.load %arg4[%c0_24, %c0_25] : memref<32x32xf32, #tpu.memory_space<vmem>>, vector<32x32xf32>
    %cst_26 = arith.constant dense<0.000000e+00> : vector<8x32xf32>
    %44 = tpu.matmul %42, %43, %cst_26 {dimension_numbers = #tpu.dot_dimension_numbers<[1], [0], [0], [1], [0, 0, 1, 1], [], []>} : vector<8x32xf32>, vector<32x32xf32>, vector<8x32xf32> -> vector<8x32xf32>
    %c0_27 = arith.constant 0 : index
    %c0_28 = arith.constant 0 : index
    %45 = vector.load %arg5[%c0_27, %c0_28] : memref<1x32xf32, #tpu.memory_space<vmem>>, vector<1x32xf32>
    %46 = vector.broadcast %45 : vector<1x32xf32> to vector<8x32xf32>
    %47 = arith.addf %44, %46 : vector<8x32xf32>
    %48 = arith.addf %1, %47 : vector<8x32xf32>
    %c0_29 = arith.constant 0 : index
    %c0_30 = arith.constant 0 : index
    %49 = vector.load %arg6[%c0_29, %c0_30] : memref<1x32xf32, #tpu.memory_space<vmem>>, vector<1x32xf32>
    %c0_31 = arith.constant 0 : index
    %c0_32 = arith.constant 0 : index
    %50 = vector.load %arg7[%c0_31, %c0_32] : memref<1x32xf32, #tpu.memory_space<vmem>>, vector<1x32xf32>
    %cst_33 = arith.constant dense<0.000000e+00> : vector<8xf32>
    %51 = vector.multi_reduction <add>, %48, %cst_33 [1] : vector<8x32xf32> to vector<8xf32>
    %52 = vector.shape_cast %51 : vector<8xf32> to vector<8x1xf32>
    %cst_34 = arith.constant 3.200000e+01 : f32
    %53 = vector.broadcast %cst_34 : f32 to vector<8x1xf32>
    %54 = arith.divf %52, %53 : vector<8x1xf32>
    %55 = vector.broadcast %54 : vector<8x1xf32> to vector<8x32xf32>
    %56 = arith.subf %48, %55 : vector<8x32xf32>
    %57 = arith.mulf %56, %56 : vector<8x32xf32>
    %cst_35 = arith.constant dense<0.000000e+00> : vector<8xf32>
    %58 = vector.multi_reduction <add>, %57, %cst_35 [1] : vector<8x32xf32> to vector<8xf32>
    %59 = vector.shape_cast %58 : vector<8xf32> to vector<8x1xf32>
    %cst_36 = arith.constant 3.200000e+01 : f32
    %60 = vector.broadcast %cst_36 : f32 to vector<8x1xf32>
    %61 = arith.divf %59, %60 : vector<8x1xf32>
    %62 = vector.broadcast %54 : vector<8x1xf32> to vector<8x32xf32>
    %63 = arith.subf %48, %62 : vector<8x32xf32>
    %cst_37 = arith.constant 9.99999974E-6 : f32
    %64 = vector.broadcast %cst_37 : f32 to vector<8x1xf32>
    %65 = arith.addf %61, %64 : vector<8x1xf32>
    %66 = math.rsqrt %65 : vector<8x1xf32>
    %67 = vector.broadcast %66 : vector<8x1xf32> to vector<8x32xf32>
    %68 = arith.mulf %63, %67 : vector<8x32xf32>
    %69 = vector.broadcast %49 : vector<1x32xf32> to vector<8x32xf32>
    %70 = arith.mulf %68, %69 : vector<8x32xf32>
    %71 = vector.broadcast %50 : vector<1x32xf32> to vector<8x32xf32>
    %72 = arith.addf %70, %71 : vector<8x32xf32>
    %c0_38 = arith.constant 0 : index
    %c0_39 = arith.constant 0 : index
    %73 = vector.load %arg8[%c0_38, %c0_39] : memref<32x32xf32, #tpu.memory_space<vmem>>, vector<32x32xf32>
    %cst_40 = arith.constant dense<0.000000e+00> : vector<8x32xf32>
    %74 = tpu.matmul %72, %73, %cst_40 {dimension_numbers = #tpu.dot_dimension_numbers<[1], [0], [0], [1], [0, 0, 1, 1], [], []>} : vector<8x32xf32>, vector<32x32xf32>, vector<8x32xf32> -> vector<8x32xf32>
    %c0_41 = arith.constant 0 : index
    %c0_42 = arith.constant 0 : index
    %75 = vector.load %arg9[%c0_41, %c0_42] : memref<1x32xf32, #tpu.memory_space<vmem>>, vector<1x32xf32>
    %76 = vector.broadcast %75 : vector<1x32xf32> to vector<8x32xf32>
    %77 = arith.addf %74, %76 : vector<8x32xf32>
    %cst_43 = arith.constant 0.000000e+00 : f32
    %78 = vector.broadcast %cst_43 : f32 to vector<8x32xf32>
    %79 = arith.maximumf %77, %78 : vector<8x32xf32>
    %c0_44 = arith.constant 0 : index
    %c0_45 = arith.constant 0 : index
    %80 = vector.load %arg10[%c0_44, %c0_45] : memref<32x32xf32, #tpu.memory_space<vmem>>, vector<32x32xf32>
    %cst_46 = arith.constant dense<0.000000e+00> : vector<8x32xf32>
    %81 = tpu.matmul %79, %80, %cst_46 {dimension_numbers = #tpu.dot_dimension_numbers<[1], [0], [0], [1], [0, 0, 1, 1], [], []>} : vector<8x32xf32>, vector<32x32xf32>, vector<8x32xf32> -> vector<8x32xf32>
    %c0_47 = arith.constant 0 : index
    %c0_48 = arith.constant 0 : index
    %82 = vector.load %arg11[%c0_47, %c0_48] : memref<1x32xf32, #tpu.memory_space<vmem>>, vector<1x32xf32>
    %83 = vector.broadcast %82 : vector<1x32xf32> to vector<8x32xf32>
    %84 = arith.addf %81, %83 : vector<8x32xf32>
    %85 = arith.addf %72, %84 : vector<8x32xf32>
    %c0_49 = arith.constant 0 : index
    %c0_50 = arith.constant 0 : index
    %86 = vector.load %arg12[%c0_49, %c0_50] : memref<1x32xf32, #tpu.memory_space<vmem>>, vector<1x32xf32>
    %c0_51 = arith.constant 0 : index
    %c0_52 = arith.constant 0 : index
    %87 = vector.load %arg13[%c0_51, %c0_52] : memref<1x32xf32, #tpu.memory_space<vmem>>, vector<1x32xf32>
    %cst_53 = arith.constant dense<0.000000e+00> : vector<8xf32>
    %88 = vector.multi_reduction <add>, %85, %cst_53 [1] : vector<8x32xf32> to vector<8xf32>
    %89 = vector.shape_cast %88 : vector<8xf32> to vector<8x1xf32>
    %cst_54 = arith.constant 3.200000e+01 : f32
    %90 = vector.broadcast %cst_54 : f32 to vector<8x1xf32>
    %91 = arith.divf %89, %90 : vector<8x1xf32>
    %92 = vector.broadcast %91 : vector<8x1xf32> to vector<8x32xf32>
    %93 = arith.subf %85, %92 : vector<8x32xf32>
    %94 = arith.mulf %93, %93 : vector<8x32xf32>
    %cst_55 = arith.constant dense<0.000000e+00> : vector<8xf32>
    %95 = vector.multi_reduction <add>, %94, %cst_55 [1] : vector<8x32xf32> to vector<8xf32>
    %96 = vector.shape_cast %95 : vector<8xf32> to vector<8x1xf32>
    %cst_56 = arith.constant 3.200000e+01 : f32
    %97 = vector.broadcast %cst_56 : f32 to vector<8x1xf32>
    %98 = arith.divf %96, %97 : vector<8x1xf32>
    %99 = vector.broadcast %91 : vector<8x1xf32> to vector<8x32xf32>
    %100 = arith.subf %85, %99 : vector<8x32xf32>
    %cst_57 = arith.constant 9.99999974E-6 : f32
    %101 = vector.broadcast %cst_57 : f32 to vector<8x1xf32>
    %102 = arith.addf %98, %101 : vector<8x1xf32>
    %103 = math.rsqrt %102 : vector<8x1xf32>
    %104 = vector.broadcast %103 : vector<8x1xf32> to vector<8x32xf32>
    %105 = arith.mulf %100, %104 : vector<8x32xf32>
    %106 = vector.broadcast %86 : vector<1x32xf32> to vector<8x32xf32>
    %107 = arith.mulf %105, %106 : vector<8x32xf32>
    %108 = vector.broadcast %87 : vector<1x32xf32> to vector<8x32xf32>
    %109 = arith.addf %107, %108 : vector<8x32xf32>
    %c0_58 = arith.constant 0 : index
    %c0_59 = arith.constant 0 : index
    %c0_60 = arith.constant 0 : index
    %110 = vector.load %arg14[%c0_58, %c0_59, %c0_60] : memref<1x8x32xf32, #tpu.memory_space<vmem>>, vector<1x8x32xf32>
    %111 = vector.shape_cast %110 : vector<1x8x32xf32> to vector<8x32xf32>
    %112 = vector.shape_cast %109 : vector<8x32xf32> to vector<1x8x32xf32>
    tpu.vector_store %arg14[%c0_58, %c0_59, %c0_60], %112 {strides = array<i32>} : memref<1x8x32xf32, #tpu.memory_space<vmem>>, vector<1x8x32xf32>,
    return
  }
  func.func @transform_0(%arg0: i32) -> (i32, i32, i32) {
    %c0_i32 = arith.constant 0 : i32
    %c0_i32_0 = arith.constant 0 : i32
    %c0_i32_1 = arith.constant 0 : i32
    return %arg0, %c0_i32, %c0_i32_0 : i32, i32, i32
  }
  func.func @transform_1(%arg0: i32) -> (i32, i32, i32) {
    %c0_i32 = arith.constant 0 : i32
    %c0_i32_0 = arith.constant 0 : i32
    %c0_i32_1 = arith.constant 0 : i32
    %c0_i32_2 = arith.constant 0 : i32
    return %c0_i32, %c0_i32_0, %c0_i32_1 : i32, i32, i32
  }
  func.func @transform_2(%arg0: i32) -> (i32, i32, i32) {
    %c0_i32 = arith.constant 0 : i32
    %c0_i32_0 = arith.constant 0 : i32
    %c0_i32_1 = arith.constant 0 : i32
    %c0_i32_2 = arith.constant 0 : i32
    return %c0_i32, %c0_i32_0, %c0_i32_1 : i32, i32, i32
  }
  func.func @transform_3(%arg0: i32) -> (i32, i32) {
    %c0_i32 = arith.constant 0 : i32
    %c0_i32_0 = arith.constant 0 : i32
    %c0_i32_1 = arith.constant 0 : i32
    return %c0_i32, %c0_i32_0 : i32, i32
  }
  func.func @transform_4(%arg0: i32) -> (i32, i32) {
    %c0_i32 = arith.constant 0 : i32
    %c0_i32_0 = arith.constant 0 : i32
    %c0_i32_1 = arith.constant 0 : i32
    return %c0_i32, %c0_i32_0 : i32, i32
  }
  func.func @transform_5(%arg0: i32) -> (i32, i32) {
    %c0_i32 = arith.constant 0 : i32
    %c0_i32_0 = arith.constant 0 : i32
    %c0_i32_1 = arith.constant 0 : i32
    return %c0_i32, %c0_i32_0 : i32, i32
  }
  func.func @transform_6(%arg0: i32) -> (i32, i32) {
    %c0_i32 = arith.constant 0 : i32
    %c0_i32_0 = arith.constant 0 : i32
    %c0_i32_1 = arith.constant 0 : i32
    return %c0_i32, %c0_i32_0 : i32, i32
  }
  func.func @transform_7(%arg0: i32) -> (i32, i32) {
    %c0_i32 = arith.constant 0 : i32
    %c0_i32_0 = arith.constant 0 : i32
    %c0_i32_1 = arith.constant 0 : i32
    return %c0_i32, %c0_i32_0 : i32, i32
  }
  func.func @transform_8(%arg0: i32) -> (i32, i32) {
    %c0_i32 = arith.constant 0 : i32
    %c0_i32_0 = arith.constant 0 : i32
    %c0_i32_1 = arith.constant 0 : i32
    return %c0_i32, %c0_i32_0 : i32, i32
  }
  func.func @transform_9(%arg0: i32) -> (i32, i32) {
    %c0_i32 = arith.constant 0 : i32
    %c0_i32_0 = arith.constant 0 : i32
    %c0_i32_1 = arith.constant 0 : i32
    return %c0_i32, %c0_i32_0 : i32, i32
  }
  func.func @transform_10(%arg0: i32) -> (i32, i32) {
    %c0_i32 = arith.constant 0 : i32
    %c0_i32_0 = arith.constant 0 : i32
    %c0_i32_1 = arith.constant 0 : i32
    return %c0_i32, %c0_i32_0 : i32, i32
  }
  func.func @transform_11(%arg0: i32) -> (i32, i32) {
    %c0_i32 = arith.constant 0 : i32
    %c0_i32_0 = arith.constant 0 : i32
    %c0_i32_1 = arith.constant 0 : i32
    return %c0_i32, %c0_i32_0 : i32, i32
  }
  func.func @transform_12(%arg0: i32) -> (i32, i32) {
    %c0_i32 = arith.constant 0 : i32
    %c0_i32_0 = arith.constant 0 : i32
    %c0_i32_1 = arith.constant 0 : i32
    return %c0_i32, %c0_i32_0 : i32, i32
  }
  func.func @transform_13(%arg0: i32) -> (i32, i32, i32) {
    %c0_i32 = arith.constant 0 : i32
    %c0_i32_0 = arith.constant 0 : i32
    %c0_i32_1 = arith.constant 0 : i32
    return %arg0, %c0_i32, %c0_i32_0 : i32, i32, i32
  }
}

</mosaic_0001>

<llo_original>
// kernel: sab_forward.1
$region0: #{sab_forward.1}
  #allocation0 [shape = 'u32[]', space=smem, size = 0x4, offset = 0x4, fixed_abs, tag = 'smem constant byte address 0x4 - core index']
  #allocation1 [shape = 'u32[144,128]{1,0:T(1,128)}', space=vmem, size = 0x12000, scoped, tag = 'internal scratch']
  %s0 = inlined_call_operand.vmem [shape: f32[2,8,32], index: 0, kind: input, shape index: {}]
  %s1 = inlined_call_operand.hbm [shape: f32[3,32,32], index: 1, kind: input, shape index: {}]
  %s2 = inlined_call_operand.hbm [shape: f32[3,1,32], index: 2, kind: input, shape index: {}]
  %s3 = inlined_call_operand.vmem [shape: f32[32,32], index: 3, kind: input, shape index: {}]
  %s4 = inlined_call_operand.vmem [shape: f32[1,32], index: 4, kind: input, shape index: {}]
  %s5 = inlined_call_operand.vmem [shape: f32[1,32], index: 5, kind: input, shape index: {}]
  %s6 = inlined_call_operand.hbm [shape: f32[1,32], index: 6, kind: input, shape index: {}]
  %s7 = inlined_call_operand.vmem [shape: f32[32,32], index: 7, kind: input, shape index: {}]
  %s8 = inlined_call_operand.hbm [shape: f32[1,32], index: 8, kind: input, shape index: {}]
  %s9 = inlined_call_operand.hbm [shape: f32[32,32], index: 9, kind: input, shape index: {}]
  %s10 = inlined_call_operand.hbm [shape: f32[1,32], index: 10, kind: input, shape index: {}]
  %s11 = inlined_call_operand.hbm [shape: f32[1,32], index: 11, kind: input, shape index: {}]
  %s12 = inlined_call_operand.hbm [shape: f32[1,32], index: 12, kind: input, shape index: {}]
  %s13 = inlined_call_operand.vmem [shape: f32[2,8,32], index: 13, kind: output, shape index: {}]
  %s14 = sld [smem:[#allocation0]]
  $region117: #{sab_forward.1} parent=0
    _
  %s16 = ssub.s32 1, %s14
  %s17 = scalar_select 0, %s16, %s14
  $region1: #{sab_forward.1} parent=0
    #allocation2 [shape = 'u8[49152]{0}', space=vmem, size = 0xc000, scoped, tag = 'input window, operand 1, single buffered']
    #allocation3 [shape = 's32[2]{0}', space=sflag, size = 0x8, scoped, tag = 'scoped memory for sab_forward.1']
    #allocation4 [shape = 'u8[1536]{0}', space=vmem, size = 0x800, scoped, tag = 'input window, operand 2, single buffered']
    #allocation5 [shape = 's32[1]{0}', space=sflag, size = 0x4, scoped, tag = 'scoped memory for sab_forward.1']
    #allocation6 [shape = 'u8[512]{0}', space=vmem, size = 0x400, scoped, tag = 'input window, operand 6, single buffered']
    #allocation7 [shape = 'u8[512]{0}', space=vmem, size = 0x400, scoped, tag = 'input window, operand 8, single buffered']
    #allocation8 [shape = 's32[1]{0}', space=sflag, size = 0x4, scoped, tag = 'scoped memory for sab_forward.1']
    #allocation9 [shape = 'u8[16384]{0}', space=vmem, size = 0x4000, scoped, tag = 'input window, operand 9, single buffered']
    #allocation10 [shape = 'u8[512]{0}', space=vmem, size = 0x400, scoped, tag = 'input window, operand 10, single buffered']
    #allocation11 [shape = 's32[1]{0}', space=sflag, size = 0x4, scoped, tag = 'scoped memory for sab_forward.1']
    #allocation12 [shape = 'u8[512]{0}', space=vmem, size = 0x400, scoped, tag = 'input window, operand 11, single buffered']
    #allocation13 [shape = 'u8[512]{0}', space=vmem, size = 0x400, scoped, tag = 'input window, operand 12, single buffered']
    #allocation14 [shape = 's32[1]{0}', space=sflag, size = 0x4, scoped, tag = 'scoped memory for sab_forward.1']
    %18 = vsyncpa [#allocation3], 0
    %19 = vsyncpa [#allocation5], 0
    %20 = vsyncpa [#allocation8], 0
    %21 = vsyncpa [#allocation11], 0
    %22 = vsyncpa [#allocation14], 0
    loop: start=0, step=1, limit=4
    $region2: #{sab_forward.1} parent=1 // loop_pre_header
      _
    $region3: #{sab_forward.1} parent=1 // loop_header
      %s24 = sphi 0, %s28
      %p25 = scmp.ge.s32.totalorder %s24, 4
      %s34 = sphi 0, %s36
      %s37 = sphi 0, %s34
      %s38 = sphi 0, %s37
      %s54 = sphi 0, %s38
      %s58 = sphi 0, %s58
      %s60 = sphi 0, %s58
      %s61 = sphi 0, %s60
      %s75 = sphi 0, %s61
      %s79 = sphi 0, %s79
      %s81 = sphi 0, %s79
      %s82 = sphi 0, %s81
      %s96 = sphi 0, %s82
      %s100 = sphi 0, %s100
      %s102 = sphi 0, %s100
      %s103 = sphi 0, %s102
      %s117 = sphi 0, %s103
      %s121 = sphi 0, %s121
      %s123 = sphi 0, %s121
      %s124 = sphi 0, %s123
      %s138 = sphi 0, %s124
      %s142 = sphi 0, %s142
      %s144 = sphi 0, %s142
      %s145 = sphi 0, %s144
      %s159 = sphi 0, %s145
      %s163 = sphi 0, %s163
      %s165 = sphi 0, %s163
      %s166 = sphi 0, %s165
      %s180 = sphi 0, %s166
      %s184 = sphi 0, %s184
      %s186 = sphi 0, %s184
      %s187 = sphi 0, %s186
      %s201 = sphi 0, %s187
      %s205 = sphi 0, %s205
      %s207 = sphi 0, %s205
      %s208 = sphi 0, %s207
      %s222 = sphi 0, %s208
      %s226 = sphi 0, %s226
      %s228 = sphi 0, %s226
      %s229 = sphi 0, %s228
      %s243 = sphi 0, %s229
      %s247 = sphi 0, %s247
      %s249 = sphi 0, %s247
      %s250 = sphi 0, %s249
      %s264 = sphi 0, %s250
      %s268 = sphi 0, %s268
      %s270 = sphi 0, %s268
      %s271 = sphi 0, %s270
      %s285 = sphi 0, %s271
      %s289 = sphi 0, %s289
      %s291 = sphi 0, %s289
      %s292 = sphi 0, %s291
      %s306 = sphi 0, %s292
      %s312 = sphi 0, %s314
      %s315 = sphi 0, %s312
      %s316 = sphi 0, %s315
      %s332 = sphi 0, %s316
    $region4: #{sab_forward.1} parent=1 // loop_header_branch
      %27 = sbr.rel (%p25) target = $region8
    $region5: #{sab_forward.1} parent=1 // loop_body
      %s29 = ssub.s32 %s24, 1
      %s30 = ssub.s32 %s24, 2
      %s31 = sadd.s32 %s24, 1
      %s32 = ssub.s32 %s24, %s31
      %p33 = scmp.eq.s32.totalorder %s32, 0
      %s35 = sadd.s32 %s34, 1
      %s36 = scalar_select %p33, %s34, %s35
      %p39 = pneg %p33
      %p40 = scmp.eq.s32.totalorder %s24, 1
      %p41 = por %p39, %p40
      %p42 = scmp.ne.s32.totalorder %s34, %s37
      %p43 = scmp.eq.s32.totalorder %s24, 0
      %p44 = por %p42, %p43
      %p45 = scmp.ne.s32.totalorder %s34, %s37
      %p46 = scmp.eq.s32.totalorder %s29, 1
      %p47 = por %p45, %p46
      %p48 = scmp.ne.s32.totalorder %s37, %s38
      %p49 = scmp.eq.s32.totalorder %s29, 0
      %p50 = por %p48, %p49
      %p51 = scmp.ne.s32.totalorder %s37, %s38
      %p52 = scmp.eq.s32.totalorder %s30, 1
      %p53 = por %p51, %p52
      %p55 = scmp.ne.s32.totalorder %s38, %s54
      %p56 = scmp.eq.s32.totalorder %s30, 0
      %p57 = por %p55, %p56
      %s59 = sadd.s32 %s58, 1
      %p62 = scmp.eq.s32.totalorder %s24, 1
      %p63 = scmp.ne.s32.totalorder %s58, %s60
      %p64 = scmp.eq.s32.totalorder %s24, 0
      %p65 = por %p63, %p64
      %p66 = scmp.ne.s32.totalorder %s58, %s60
      %p67 = scmp.eq.s32.totalorder %s29, 1
      %p68 = por %p66, %p67
      %p69 = scmp.ne.s32.totalorder %s60, %s61
      %p70 = scmp.eq.s32.totalorder %s29, 0
      %p71 = por %p69, %p70
      %p72 = scmp.ne.s32.totalorder %s60, %s61
      %p73 = scmp.eq.s32.totalorder %s30, 1
      %p74 = por %p72, %p73
      %p76 = scmp.ne.s32.totalorder %s61, %s75
      %p77 = scmp.eq.s32.totalorder %s30, 0
      %p78 = por %p76, %p77
      %s80 = sadd.s32 %s79, 1
      %p83 = scmp.eq.s32.totalorder %s24, 1
      %p84 = scmp.ne.s32.totalorder %s79, %s81
      %p85 = scmp.eq.s32.totalorder %s24, 0
      %p86 = por %p84, %p85
      %p87 = scmp.ne.s32.totalorder %s79, %s81
      %p88 = scmp.eq.s32.totalorder %s29, 1
      %p89 = por %p87, %p88
      %p90 = scmp.ne.s32.totalorder %s81, %s82
      %p91 = scmp.eq.s32.totalorder %s29, 0
      %p92 = por %p90, %p91
      %p93 = scmp.ne.s32.totalorder %s81, %s82
      %p94 = scmp.eq.s32.totalorder %s30, 1
      %p95 = por %p93, %p94
      %p97 = scmp.ne.s32.totalorder %s82, %s96
      %p98 = scmp.eq.s32.totalorder %s30, 0
      %p99 = por %p97, %p98
      %s101 = sadd.s32 %s100, 1
      %p104 = scmp.eq.s32.totalorder %s24, 1
      %p105 = scmp.ne.s32.totalorder %s100, %s102
      %p106 = scmp.eq.s32.totalorder %s24, 0
      %p107 = por %p105, %p106
      %p108 = scmp.ne.s32.totalorder %s100, %s102
      %p109 = scmp.eq.s32.totalorder %s29, 1
      %p110 = por %p108, %p109
      %p111 = scmp.ne.s32.totalorder %s102, %s103
      %p112 = scmp.eq.s32.totalorder %s29, 0
      %p113 = por %p111, %p112
      %p114 = scmp.ne.s32.totalorder %s102, %s103
      %p115 = scmp.eq.s32.totalorder %s30, 1
      %p116 = por %p114, %p115
      %p118 = scmp.ne.s32.totalorder %s103, %s117
      %p119 = scmp.eq.s32.totalorder %s30, 0
      %p120 = por %p118, %p119
      %s122 = sadd.s32 %s121, 1
      %p125 = scmp.eq.s32.totalorder %s24, 1
      %p126 = scmp.ne.s32.totalorder %s121, %s123
      %p127 = scmp.eq.s32.totalorder %s24, 0
      %p128 = por %p126, %p127
      %p129 = scmp.ne.s32.totalorder %s121, %s123
      %p130 = scmp.eq.s32.totalorder %s29, 1
      %p131 = por %p129, %p130
      %p132 = scmp.ne.s32.totalorder %s123, %s124
      %p133 = scmp.eq.s32.totalorder %s29, 0
      %p134 = por %p132, %p133
      %p135 = scmp.ne.s32.totalorder %s123, %s124
      %p136 = scmp.eq.s32.totalorder %s30, 1
      %p137 = por %p135, %p136
      %p139 = scmp.ne.s32.totalorder %s124, %s138
      %p140 = scmp.eq.s32.totalorder %s30, 0
      %p141 = por %p139, %p140
      %s143 = sadd.s32 %s142, 1
      %p146 = scmp.eq.s32.totalorder %s24, 1
      %p147 = scmp.ne.s32.totalorder %s142, %s144
      %p148 = scmp.eq.s32.totalorder %s24, 0
      %p149 = por %p147, %p148
      %p150 = scmp.ne.s32.totalorder %s142, %s144
      %p151 = scmp.eq.s32.totalorder %s29, 1
      %p152 = por %p150, %p151
      %p153 = scmp.ne.s32.totalorder %s144, %s145
      %p154 = scmp.eq.s32.totalorder %s29, 0
      %p155 = por %p153, %p154
      %p156 = scmp.ne.s32.totalorder %s144, %s145
      %p157 = scmp.eq.s32.totalorder %s30, 1
      %p158 = por %p156, %p157
      %p160 = scmp.ne.s32.totalorder %s145, %s159
      %p161 = scmp.eq.s32.totalorder %s30, 0
      %p162 = por %p160, %p161
      %s164 = sadd.s32 %s163, 1
      %p167 = scmp.eq.s32.totalorder %s24, 1
      %p168 = scmp.ne.s32.totalorder %s163, %s165
      %p169 = scmp.eq.s32.totalorder %s24, 0
      %p170 = por %p168, %p169
      %p171 = scmp.ne.s32.totalorder %s163, %s165
      %p172 = scmp.eq.s32.totalorder %s29, 1
      %p173 = por %p171, %p172
      %p174 = scmp.ne.s32.totalorder %s165, %s166
      %p175 = scmp.eq.s32.totalorder %s29, 0
      %p176 = por %p174, %p175
      %p177 = scmp.ne.s32.totalorder %s165, %s166
      %p178 = scmp.eq.s32.totalorder %s30, 1
      %p179 = por %p177, %p178
      %p181 = scmp.ne.s32.totalorder %s166, %s180
      %p182 = scmp.eq.s32.totalorder %s30, 0
      %p183 = por %p181, %p182
      %s185 = sadd.s32 %s184, 1
      %p188 = scmp.eq.s32.totalorder %s24, 1
      %p189 = scmp.ne.s32.totalorder %s184, %s186
      %p190 = scmp.eq.s32.totalorder %s24, 0
      %p191 = por %p189, %p190
      %p192 = scmp.ne.s32.totalorder %s184, %s186
      %p193 = scmp.eq.s32.totalorder %s29, 1
      %p194 = por %p192, %p193
      %p195 = scmp.ne.s32.totalorder %s186, %s187
      %p196 = scmp.eq.s32.totalorder %s29, 0
      %p197 = por %p195, %p196
      %p198 = scmp.ne.s32.totalorder %s186, %s187
      %p199 = scmp.eq.s32.totalorder %s30, 1
      %p200 = por %p198, %p199
      %p202 = scmp.ne.s32.totalorder %s187, %s201
      %p203 = scmp.eq.s32.totalorder %s30, 0
      %p204 = por %p202, %p203
      %s206 = sadd.s32 %s205, 1
      %p209 = scmp.eq.s32.totalorder %s24, 1
      %p210 = scmp.ne.s32.totalorder %s205, %s207
      %p211 = scmp.eq.s32.totalorder %s24, 0
      %p212 = por %p210, %p211
      %p213 = scmp.ne.s32.totalorder %s205, %s207
      %p214 = scmp.eq.s32.totalorder %s29, 1
      %p215 = por %p213, %p214
      %p216 = scmp.ne.s32.totalorder %s207, %s208
      %p217 = scmp.eq.s32.totalorder %s29, 0
      %p218 = por %p216, %p217
      %p219 = scmp.ne.s32.totalorder %s207, %s208
      %p220 = scmp.eq.s32.totalorder %s30, 1
      %p221 = por %p219, %p220
      %p223 = scmp.ne.s32.totalorder %s208, %s222
      %p224 = scmp.eq.s32.totalorder %s30, 0
      %p225 = por %p223, %p224
      %s227 = sadd.s32 %s226, 1
      %p230 = scmp.eq.s32.totalorder %s24, 1
      %p231 = scmp.ne.s32.totalorder %s226, %s228
      %p232 = scmp.eq.s32.totalorder %s24, 0
      %p233 = por %p231, %p232
      %p234 = scmp.ne.s32.totalorder %s226, %s228
      %p235 = scmp.eq.s32.totalorder %s29, 1
      %p236 = por %p234, %p235
      %p237 = scmp.ne.s32.totalorder %s228, %s229
      %p238 = scmp.eq.s32.totalorder %s29, 0
      %p239 = por %p237, %p238
      %p240 = scmp.ne.s32.totalorder %s228, %s229
      %p241 = scmp.eq.s32.totalorder %s30, 1
      %p242 = por %p240, %p241
      %p244 = scmp.ne.s32.totalorder %s229, %s243
      %p245 = scmp.eq.s32.totalorder %s30, 0
      %p246 = por %p244, %p245
      %s248 = sadd.s32 %s247, 1
      %p251 = scmp.eq.s32.totalorder %s24, 1
      %p252 = scmp.ne.s32.totalorder %s247, %s249
      %p253 = scmp.eq.s32.totalorder %s24, 0
      %p254 = por %p252, %p253
      %p255 = scmp.ne.s32.totalorder %s247, %s249
      %p256 = scmp.eq.s32.totalorder %s29, 1
      %p257 = por %p255, %p256
      %p258 = scmp.ne.s32.totalorder %s249, %s250
      %p259 = scmp.eq.s32.totalorder %s29, 0
      %p260 = por %p258, %p259
      %p261 = scmp.ne.s32.totalorder %s249, %s250
      %p262 = scmp.eq.s32.totalorder %s30, 1
      %p263 = por %p261, %p262
      %p265 = scmp.ne.s32.totalorder %s250, %s264
      %p266 = scmp.eq.s32.totalorder %s30, 0
      %p267 = por %p265, %p266
      %s269 = sadd.s32 %s268, 1
      %p272 = scmp.eq.s32.totalorder %s24, 1
      %p273 = scmp.ne.s32.totalorder %s268, %s270
      %p274 = scmp.eq.s32.totalorder %s24, 0
      %p275 = por %p273, %p274
      %p276 = scmp.ne.s32.totalorder %s268, %s270
      %p277 = scmp.eq.s32.totalorder %s29, 1
      %p278 = por %p276, %p277
      %p279 = scmp.ne.s32.totalorder %s270, %s271
      %p280 = scmp.eq.s32.totalorder %s29, 0
      %p281 = por %p279, %p280
      %p282 = scmp.ne.s32.totalorder %s270, %s271
      %p283 = scmp.eq.s32.totalorder %s30, 1
      %p284 = por %p282, %p283
      %p286 = scmp.ne.s32.totalorder %s271, %s285
      %p287 = scmp.eq.s32.totalorder %s30, 0
      %p288 = por %p286, %p287
      %s290 = sadd.s32 %s289, 1
      %p293 = scmp.eq.s32.totalorder %s24, 1
      %p294 = scmp.ne.s32.totalorder %s289, %s291
      %p295 = scmp.eq.s32.totalorder %s24, 0
      %p296 = por %p294, %p295
      %p297 = scmp.ne.s32.totalorder %s289, %s291
      %p298 = scmp.eq.s32.totalorder %s29, 1
      %p299 = por %p297, %p298
      %p300 = scmp.ne.s32.totalorder %s291, %s292
      %p301 = scmp.eq.s32.totalorder %s29, 0
      %p302 = por %p300, %p301
      %p303 = scmp.ne.s32.totalorder %s291, %s292
      %p304 = scmp.eq.s32.totalorder %s30, 1
      %p305 = por %p303, %p304
      %p307 = scmp.ne.s32.totalorder %s292, %s306
      %p308 = scmp.eq.s32.totalorder %s30, 0
      %p309 = por %p307, %p308
      %s310 = ssub.s32 %s24, %s31
      %p311 = scmp.eq.s32.totalorder %s310, 0
      %s313 = sadd.s32 %s312, 1
      %s314 = scalar_select %p311, %s312, %s313
      %p317 = pneg %p311
      %p318 = scmp.eq.s32.totalorder %s24, 1
      %p319 = por %p317, %p318
      %p320 = scmp.ne.s32.totalorder %s312, %s315
      %p321 = scmp.eq.s32.totalorder %s24, 0
      %p322 = por %p320, %p321
      %p323 = scmp.ne.s32.totalorder %s312, %s315
      %p324 = scmp.eq.s32.totalorder %s29, 1
      %p325 = por %p323, %p324
      %p326 = scmp.ne.s32.totalorder %s315, %s316
      %p327 = scmp.eq.s32.totalorder %s29, 0
      %p328 = por %p326, %p327
      %p329 = scmp.ne.s32.totalorder %s315, %s316
      %p330 = scmp.eq.s32.totalorder %s30, 1
      %p331 = por %p329, %p330
      %p333 = scmp.ne.s32.totalorder %s316, %s332
      %p334 = scmp.eq.s32.totalorder %s30, 0
      %p335 = por %p333, %p334
      %p336 = scmp.le.s32.totalorder 1, %s24
      %p337 = scmp.lt.s32.totalorder %s24, 3
      %p338 = pnand %p336, %p337
      %p339 = pneg %p338
      // Predicated region
      $region9: #{sab_forward.1} parent=5 // pred_check
        _
      $region10: #{sab_forward.1} parent=5 // pred_check_branch
        %341 = sbr.rel (%p338) target = $region12
      $region11: #{sab_forward.1} parent=5 // pred_region
        %s342 = ssub.s32 %s24, 1
        // Predicated region
        $region13: #{sab_forward.1} parent=11 // pred_check
          %p343 = pneg %p71
        $region14: #{sab_forward.1} parent=11 // pred_check_branch
          %345 = sbr.rel (%p343) target = $region16
        $region15: #{sab_forward.1} parent=11 // pred_region
          %s347 = ssub.s32 1536, 1536
          %348 = vsyncadd [#allocation3], %s347
          %s349 = sshll.u32 [#allocation2], 4
          %s350 = int_to_ptr.vmem [resolvable:$true] %s349
          %355 = dma.hbm_to_vmem [thread:$0]  %s1, 1536, %s350, [#allocation3], 128, 128, 8
        $region16: #{sab_forward.1} parent=11 // pred_fallthru
          _
        // Predicated region
        $region17: #{sab_forward.1} parent=11 // pred_check
          %p356 = pneg %p92
        $region18: #{sab_forward.1} parent=11 // pred_check_branch
          %358 = sbr.rel (%p356) target = $region20
        $region19: #{sab_forward.1} parent=11 // pred_region
          %s360 = ssub.s32 48, 48
          %361 = vsyncadd [#allocation5], %s360
          %s362 = sshll.u32 [#allocation4], 4
          %s363 = int_to_ptr.vmem [resolvable:$true] %s362
          %368 = dma.hbm_to_vmem [thread:$0]  %s2, 48, %s363, [#allocation5], 16, 16, 1
        $region20: #{sab_forward.1} parent=11 // pred_fallthru
          _
        // Predicated region
        $region21: #{sab_forward.1} parent=11 // pred_check
          %p369 = pneg %p113
        $region22: #{sab_forward.1} parent=11 // pred_check_branch
          %371 = sbr.rel (%p369) target = $region24
        $region23: #{sab_forward.1} parent=11 // pred_region
          _
        $region24: #{sab_forward.1} parent=11 // pred_fallthru
          _
        // Predicated region
        $region25: #{sab_forward.1} parent=11 // pred_check
          %p372 = pneg %p134
        $region26: #{sab_forward.1} parent=11 // pred_check_branch
          %374 = sbr.rel (%p372) target = $region28
        $region27: #{sab_forward.1} parent=11 // pred_region
          _
        $region28: #{sab_forward.1} parent=11 // pred_fallthru
          _
        // Predicated region
        $region29: #{sab_forward.1} parent=11 // pred_check
          %p375 = pneg %p155
        $region30: #{sab_forward.1} parent=11 // pred_check_branch
          %377 = sbr.rel (%p375) target = $region32
        $region31: #{sab_forward.1} parent=11 // pred_region
          _
        $region32: #{sab_forward.1} parent=11 // pred_fallthru
          _
        // Predicated region
        $region33: #{sab_forward.1} parent=11 // pred_check
          %p378 = pneg %p176
        $region34: #{sab_forward.1} parent=11 // pred_check_branch
          %380 = sbr.rel (%p378) target = $region36
        $region35: #{sab_forward.1} parent=11 // pred_region
          %s382 = ssub.s32 16, 16
          %383 = vsyncadd [#allocation5], %s382
          %s385 = sshll.u32 [#allocation6], 4
          %s386 = int_to_ptr.vmem [resolvable:$true] %s385
          %388 = dma.hbm_to_vmem [thread:$0]  %s6, 16, %s386, [#allocation5]
        $region36: #{sab_forward.1} parent=11 // pred_fallthru
          _
        // Predicated region
        $region37: #{sab_forward.1} parent=11 // pred_check
          %p389 = pneg %p197
        $region38: #{sab_forward.1} parent=11 // pred_check_branch
          %391 = sbr.rel (%p389) target = $region40
        $region39: #{sab_forward.1} parent=11 // pred_region
          _
        $region40: #{sab_forward.1} parent=11 // pred_fallthru
          _
        // Predicated region
        $region41: #{sab_forward.1} parent=11 // pred_check
          %p392 = pneg %p218
        $region42: #{sab_forward.1} parent=11 // pred_check_branch
          %394 = sbr.rel (%p392) target = $region44
        $region43: #{sab_forward.1} parent=11 // pred_region
          %s396 = ssub.s32 16, 16
          %397 = vsyncadd [#allocation8], %s396
          %s399 = sshll.u32 [#allocation7], 4
          %s400 = int_to_ptr.vmem [resolvable:$true] %s399
          %402 = dma.hbm_to_vmem [thread:$0]  %s8, 16, %s400, [#allocation8]
        $region44: #{sab_forward.1} parent=11 // pred_fallthru
          _
        // Predicated region
        $region45: #{sab_forward.1} parent=11 // pred_check
          %p403 = pneg %p239
        $region46: #{sab_forward.1} parent=11 // pred_check_branch
          %405 = sbr.rel (%p403) target = $region48
        $region47: #{sab_forward.1} parent=11 // pred_region
          %s407 = ssub.s32 512, 512
          %408 = vsyncadd [#allocation8], %s407
          %s409 = sshll.u32 [#allocation9], 4
          %s410 = int_to_ptr.vmem [resolvable:$true] %s409
          %415 = dma.hbm_to_vmem [thread:$0]  %s9, 512, %s410, [#allocation8], 128, 128, 8
        $region48: #{sab_forward.1} parent=11 // pred_fallthru
          _
        // Predicated region
        $region49: #{sab_forward.1} parent=11 // pred_check
          %p416 = pneg %p260
        $region50: #{sab_forward.1} parent=11 // pred_check_branch
          %418 = sbr.rel (%p416) target = $region52
        $region51: #{sab_forward.1} parent=11 // pred_region
          %s420 = ssub.s32 16, 16
          %421 = vsyncadd [#allocation11], %s420
          %s423 = sshll.u32 [#allocation10], 4
          %s424 = int_to_ptr.vmem [resolvable:$true] %s423
          %426 = dma.hbm_to_vmem [thread:$0]  %s10, 16, %s424, [#allocation11]
        $region52: #{sab_forward.1} parent=11 // pred_fallthru
          _
        // Predicated region
        $region53: #{sab_forward.1} parent=11 // pred_check
          %p427 = pneg %p281
        $region54: #{sab_forward.1} parent=11 // pred_check_branch
          %429 = sbr.rel (%p427) target = $region56
        $region55: #{sab_forward.1} parent=11 // pred_region
          %s431 = ssub.s32 16, 16
          %432 = vsyncadd [#allocation11], %s431
          %s434 = sshll.u32 [#allocation12], 4
          %s435 = int_to_ptr.vmem [resolvable:$true] %s434
          %437 = dma.hbm_to_vmem [thread:$0]  %s11, 16, %s435, [#allocation11]
        $region56: #{sab_forward.1} parent=11 // pred_fallthru
          _
        // Predicated region
        $region57: #{sab_forward.1} parent=11 // pred_check
          %p438 = pneg %p302
        $region58: #{sab_forward.1} parent=11 // pred_check_branch
          %440 = sbr.rel (%p438) target = $region60
        $region59: #{sab_forward.1} parent=11 // pred_region
          %s442 = ssub.s32 16, 16
          %443 = vsyncadd [#allocation14], %s442
          %s445 = sshll.u32 [#allocation13], 4
          %s446 = int_to_ptr.vmem [resolvable:$true] %s445
          %448 = dma.hbm_to_vmem [thread:$0]  %s12, 16, %s446, [#allocation14]
        $region60: #{sab_forward.1} parent=11 // pred_fallthru
          _
      $region12: #{sab_forward.1} parent=5 // pred_fallthru
        _
      %p449 = scmp.lt.s32.totalorder %s24, 2
      // Predicated region
      $region61: #{sab_forward.1} parent=5 // pred_check
        %p450 = pneg %p449
      $region62: #{sab_forward.1} parent=5 // pred_check_branch
        %452 = sbr.rel (%p450) target = $region64
      $region63: #{sab_forward.1} parent=5 // pred_region
        // Predicated region
        $region65: #{sab_forward.1} parent=63 // pred_check
          %p453 = pneg %p44
        $region66: #{sab_forward.1} parent=63 // pred_check_branch
          %455 = sbr.rel (%p453) target = $region68
        $region67: #{sab_forward.1} parent=63 // pred_region
          %p456 = scmp.lt.s32.totalorder %s24, 1
          %s457 = scalar_select %p456, %s24, 1
          %s458 = smul.addr %s457, 8
          %s459 = scalar_lea.vmem %s0, %s458
        $region68: #{sab_forward.1} parent=63 // pred_fallthru
          _
      $region64: #{sab_forward.1} parent=5 // pred_fallthru
        _
      %p460 = scmp.le.s32.totalorder 1, %s24
      %p461 = scmp.lt.s32.totalorder %s24, 3
      %p462 = pnand %p460, %p461
      %p463 = pneg %p462
      // Predicated region
      $region69: #{sab_forward.1} parent=5 // pred_check
        _
      $region70: #{sab_forward.1} parent=5 // pred_check_branch
        %465 = sbr.rel (%p462) target = $region72
      $region71: #{sab_forward.1} parent=5 // pred_region
        %s466 = ssub.s32 %s24, 1
        // Predicated region
        $region73: #{sab_forward.1} parent=71 // pred_check
          %p467 = pneg %p71
        $region74: #{sab_forward.1} parent=71 // pred_check_branch
          %469 = sbr.rel (%p467) target = $region76
        $region75: #{sab_forward.1} parent=71 // pred_region
          %470 = dma.done [#allocation3], 1536
        $region76: #{sab_forward.1} parent=71 // pred_fallthru
          _
        // Predicated region
        $region77: #{sab_forward.1} parent=71 // pred_check
          %p471 = pneg %p92
        $region78: #{sab_forward.1} parent=71 // pred_check_branch
          %473 = sbr.rel (%p471) target = $region80
        $region79: #{sab_forward.1} parent=71 // pred_region
          %474 = dma.done [#allocation5], 48
        $region80: #{sab_forward.1} parent=71 // pred_fallthru
          _
        // Predicated region
        $region81: #{sab_forward.1} parent=71 // pred_check
          %p475 = pneg %p176
        $region82: #{sab_forward.1} parent=71 // pred_check_branch
          %477 = sbr.rel (%p475) target = $region84
        $region83: #{sab_forward.1} parent=71 // pred_region
          %478 = dma.done [#allocation5], 16
        $region84: #{sab_forward.1} parent=71 // pred_fallthru
          _
        // Predicated region
        $region85: #{sab_forward.1} parent=71 // pred_check
          %p479 = pneg %p218
        $region86: #{sab_forward.1} parent=71 // pred_check_branch
          %481 = sbr.rel (%p479) target = $region88
        $region87: #{sab_forward.1} parent=71 // pred_region
          %482 = dma.done [#allocation8], 16
        $region88: #{sab_forward.1} parent=71 // pred_fallthru
          _
        // Predicated region
        $region89: #{sab_forward.1} parent=71 // pred_check
          %p483 = pneg %p239
        $region90: #{sab_forward.1} parent=71 // pred_check_branch
          %485 = sbr.rel (%p483) target = $region92
        $region91: #{sab_forward.1} parent=71 // pred_region
          %486 = dma.done [#allocation8], 512
        $region92: #{sab_forward.1} parent=71 // pred_fallthru
          _
        // Predicated region
        $region93: #{sab_forward.1} parent=71 // pred_check
          %p487 = pneg %p260
        $region94: #{sab_forward.1} parent=71 // pred_check_branch
          %489 = sbr.rel (%p487) target = $region96
        $region95: #{sab_forward.1} parent=71 // pred_region
          %490 = dma.done [#allocation11], 16
        $region96: #{sab_forward.1} parent=71 // pred_fallthru
          _
        // Predicated region
        $region97: #{sab_forward.1} parent=71 // pred_check
          %p491 = pneg %p281
        $region98: #{sab_forward.1} parent=71 // pred_check_branch
          %493 = sbr.rel (%p491) target = $region100
        $region99: #{sab_forward.1} parent=71 // pred_region
          %494 = dma.done [#allocation11], 16
        $region100: #{sab_forward.1} parent=71 // pred_fallthru
          _
        // Predicated region
        $region101: #{sab_forward.1} parent=71 // pred_check
          %p495 = pneg %p302
        $region102: #{sab_forward.1} parent=71 // pred_check_branch
          %497 = sbr.rel (%p495) target = $region104
        $region103: #{sab_forward.1} parent=71 // pred_region
          %498 = dma.done [#allocation14], 16
        $region104: #{sab_forward.1} parent=71 // pred_fallthru
          _
        %p499 = scmp.lt.s32.totalorder %s29, 1
        %s500 = scalar_select %p499, %s29, 1
        %s501 = smul.addr %s500, 8
        %s502 = scalar_lea.vmem %s0, %s501
        %p503 = pneg %p50
        %p504 = pneg %p47
        %p505 = pneg %p71
        %p506 = pneg %p68
        %p507 = pneg %p92
        %p508 = pneg %p89
        %p509 = pneg %p113
        %p510 = pneg %p110
        %p511 = pneg %p134
        %p512 = pneg %p131
        %p513 = pneg %p155
        %p514 = pneg %p152
        %p515 = pneg %p176
        %p516 = pneg %p173
        %p517 = pneg %p197
        %p518 = pneg %p194
        %p519 = pneg %p218
        %p520 = pneg %p215
        %p521 = pneg %p239
        %p522 = pneg %p236
        %p523 = pneg %p260
        %p524 = pneg %p257
        %p525 = pneg %p281
        %p526 = pneg %p278
        %p527 = pneg %p302
        %p528 = pneg %p299
        %p529 = pneg %p328
        %p530 = pneg %p325
        %p531 = scmp.lt.s32.totalorder %s29, 1
        %s532 = scalar_select %p531, %s29, 1
        %s533 = smul.addr %s532, 8
        %s534 = scalar_lea.vmem %s13, %s533
        %p535 = scmp.lt.s32.totalorder %s29, 1
        %s536 = scalar_select %p535, %s29, 1
        %s537 = smul.addr %s536, 8
        %s538 = scalar_lea.vmem %s0, %s537
        %p539 = scmp.lt.s32.totalorder %s29, 1
        %s540 = scalar_select %p539, %s29, 1
        %s541 = smul.addr %s540, 8
        %s542 = scalar_lea.vmem %s13, %s541
        %v543 = vld [vmem:[%s538] sm:$0xff]
        %v544 = vld [vmem:[#allocation2] sm:$0xff]
        %v545 = vld [vmem:[#allocation2 + $0x8] sm:$0xff]
        %v546 = vld [vmem:[#allocation2 + $0x10] sm:$0xff]
        %v547 = vld [vmem:[#allocation2 + $0x18] sm:$0xff]
        %v548 = vld [vmem:[#allocation4] sm:$0x1]
        %v550 = vlaneseq
        %v551 = vshrl.u32 %v550, 7
        %v552 = vsub.s32 0, %v551
        %v553 = vrot.slane %v548, %v552
        %vm555 = vcmask 261120
        %v557 = vsel %vm555, %v543, 0
        %559 = vmatprep.subr.mxu0 0.0
        %560 = vmatpush1.msra.mxu0 %v544
        %561 = vmatprep.subr.mxu0 0.0
        %562 = vmatpush1.msra.mxu0 %v545
        %563 = vmatprep.subr.mxu0 0.0
        %564 = vmatpush1.msra.mxu0 %v546
        %565 = vmatprep.subr.mxu0 0.0
        %566 = vmatpush1.msra.mxu0 %v547
        %567 = vmatprep.subr.mxu0 0.0
        %568 = vmatpush1.msra.mxu0 0.0
        %569 = vmatprep.subr.mxu0 0.0
        %570 = vmatpush1.msra.mxu0 0.0
        %571 = vmatprep.subr.mxu0 0.0
        %572 = vmatpush1.msra.mxu0 0.0
        %573 = vmatprep.subr.mxu0 0.0
        %574 = vmatpush1.msra.mxu0 0.0
        %575 = vmatprep.subr.mxu0 0.0
        %576 = vmatpush1.msra.mxu0 0.0
        %577 = vmatprep.subr.mxu0 0.0
        %578 = vmatpush1.msra.mxu0 0.0
        %579 = vmatprep.subr.mxu0 0.0
        %580 = vmatpush1.msra.mxu0 0.0
        %581 = vmatprep.subr.mxu0 0.0
        %582 = vmatpush1.msra.mxu0 0.0
        %583 = vmatprep.subr.mxu0 0.0
        %584 = vmatpush1.msra.mxu0 0.0
        %585 = vmatprep.subr.mxu0 0.0
        %586 = vmatpush1.msra.mxu0 0.0
        %587 = vmatprep.subr.mxu0 0.0
        %588 = vmatpush1.msra.mxu0 0.0
        %589 = vmatprep.subr.mxu0 0.0
        %590 = vmatpush1.msra.mxu0 0.0
        %591 = vmatprep.subr.mxu0 0.0
        %592 = vmatpush1.msra.mxu0 0.0
        %593 = vmatprep.subr.mxu0 0.0
        %594 = vmatpush1.msra.mxu0 0.0
        %595 = vmatprep.subr.mxu0 0.0
        %596 = vmatpush1.msra.mxu0 0.0
        %597 = vmatprep.subr.mxu0 0.0
        %598 = vmatpush1.msra.mxu0 0.0
        %599 = vmatprep.subr.mxu0 0.0
        %600 = vmatpush1.msra.mxu0 0.0
        %601 = vmatprep.subr.mxu0 0.0
        %602 = vmatpush1.msra.mxu0 0.0
        %603 = vmatprep.subr.mxu0 0.0
        %604 = vmatpush1.msra.mxu0 0.0
        %605 = vmatprep.subr.mxu0 0.0
        %606 = vmatpush1.msra.mxu0 0.0
        %607 = vmatprep.subr.mxu0 0.0
        %608 = vmatpush1.msra.mxu0 0.0
        %609 = vmatprep.subr.mxu0 0.0
        %610 = vmatpush1.msra.mxu0 0.0
        %611 = vmatprep.subr.mxu0 0.0
        %612 = vmatpush1.msra.mxu0 0.0
        %613 = vmatprep.subr.mxu0 0.0
        %614 = vmatpush1.msra.mxu0 0.0
        %615 = vmatprep.subr.mxu0 0.0
        %616 = vmatpush1.msra.mxu0 0.0
        %617 = vmatprep.subr.mxu0 0.0
        %618 = vmatpush1.msra.mxu0 0.0
        %619 = vmatprep.subr.mxu0 0.0
        %620 = vmatpush1.msra.mxu0 0.0
        %621 = vmatprep.subr.mxu0 0.0
        %622 = vmatpush1.msra.mxu0 0.0
        %623 = vmatprep.mubr.f32.mxu0 0.0
        %624 = vmatmul.mubr.f32.gmra.mrb[0].mxu0 %v557
        %v625 = vpop.f32.mrb[0].mxu0
        %v626 = vadd.f32 %v553, %v625
        %v627 = vpop.f32.mrb[0].mxu0
        %628 = vdwg.mxu0
        %s629 = scalar_lea.vmem [#allocation2], 32
        %v630 = vld [vmem:[%s629] sm:$0xff]
        %v631 = vld [vmem:[%s629 + $0x8] sm:$0xff]
        %v632 = vld [vmem:[%s629 + $0x10] sm:$0xff]
        %v633 = vld [vmem:[%s629 + $0x18] sm:$0xff]
        %s634 = scalar_lea.vmem [#allocation4], 1
        %v635 = vld [vmem:[%s634] sm:$0x1]
        %v637 = vlaneseq
        %v638 = vshrl.u32 %v637, 7
        %v639 = vsub.s32 0, %v638
        %v640 = vrot.slane %v635, %v639
        %642 = vmatprep.subr.mxu0 0.0
        %643 = vmatpush1.msra.mxu0 %v630
        %644 = vmatprep.subr.mxu0 0.0
        %645 = vmatpush1.msra.mxu0 %v631
        %646 = vmatprep.subr.mxu0 0.0
        %647 = vmatpush1.msra.mxu0 %v632
        %648 = vmatprep.subr.mxu0 0.0
        %649 = vmatpush1.msra.mxu0 %v633
        %650 = vmatprep.subr.mxu0 0.0
        %651 = vmatpush1.msra.mxu0 0.0
        %652 = vmatprep.subr.mxu0 0.0
        %653 = vmatpush1.msra.mxu0 0.0
        %654 = vmatprep.subr.mxu0 0.0
        %655 = vmatpush1.msra.mxu0 0.0
        %656 = vmatprep.subr.mxu0 0.0
        %657 = vmatpush1.msra.mxu0 0.0
        %658 = vmatprep.subr.mxu0 0.0
        %659 = vmatpush1.msra.mxu0 0.0
        %660 = vmatprep.subr.mxu0 0.0
        %661 = vmatpush1.msra.mxu0 0.0
        %662 = vmatprep.subr.mxu0 0.0
        %663 = vmatpush1.msra.mxu0 0.0
        %664 = vmatprep.subr.mxu0 0.0
        %665 = vmatpush1.msra.mxu0 0.0
        %666 = vmatprep.subr.mxu0 0.0
        %667 = vmatpush1.msra.mxu0 0.0
        %668 = vmatprep.subr.mxu0 0.0
        %669 = vmatpush1.msra.mxu0 0.0
        %670 = vmatprep.subr.mxu0 0.0
        %671 = vmatpush1.msra.mxu0 0.0
        %672 = vmatprep.subr.mxu0 0.0
        %673 = vmatpush1.msra.mxu0 0.0
        %674 = vmatprep.subr.mxu0 0.0
        %675 = vmatpush1.msra.mxu0 0.0
        %676 = vmatprep.subr.mxu0 0.0
        %677 = vmatpush1.msra.mxu0 0.0
        %678 = vmatprep.subr.mxu0 0.0
        %679 = vmatpush1.msra.mxu0 0.0
        %680 = vmatprep.subr.mxu0 0.0
        %681 = vmatpush1.msra.mxu0 0.0
        %682 = vmatprep.subr.mxu0 0.0
        %683 = vmatpush1.msra.mxu0 0.0
        %684 = vmatprep.subr.mxu0 0.0
        %685 = vmatpush1.msra.mxu0 0.0
        %686 = vmatprep.subr.mxu0 0.0
        %687 = vmatpush1.msra.mxu0 0.0
        %688 = vmatprep.subr.mxu0 0.0
        %689 = vmatpush1.msra.mxu0 0.0
        %690 = vmatprep.subr.mxu0 0.0
        %691 = vmatpush1.msra.mxu0 0.0
        %692 = vmatprep.subr.mxu0 0.0
        %693 = vmatpush1.msra.mxu0 0.0
        %694 = vmatprep.subr.mxu0 0.0
        %695 = vmatpush1.msra.mxu0 0.0
        %696 = vmatprep.subr.mxu0 0.0
        %697 = vmatpush1.msra.mxu0 0.0
        %698 = vmatprep.subr.mxu0 0.0
        %699 = vmatpush1.msra.mxu0 0.0
        %700 = vmatprep.subr.mxu0 0.0
        %701 = vmatpush1.msra.mxu0 0.0
        %702 = vmatprep.subr.mxu0 0.0
        %703 = vmatpush1.msra.mxu0 0.0
        %704 = vmatprep.subr.mxu0 0.0
        %705 = vmatpush1.msra.mxu0 0.0
        %706 = vmatprep.mubr.f32.mxu0 0.0
        %707 = vmatmul.mubr.f32.gmra.mrb[0].mxu0 %v557
        %v708 = vpop.f32.mrb[0].mxu0
        %v709 = vadd.f32 %v640, %v708
        %v710 = vpop.f32.mrb[0].mxu0
        %711 = vdwg.mxu0
        %s712 = scalar_lea.vmem [#allocation2], 64
        %v713 = vld [vmem:[%s712] sm:$0xff]
        %v714 = vld [vmem:[%s712 + $0x8] sm:$0xff]
        %v715 = vld [vmem:[%s712 + $0x10] sm:$0xff]
        %v716 = vld [vmem:[%s712 + $0x18] sm:$0xff]
        %s717 = scalar_lea.vmem [#allocation4], 2
        %v718 = vld [vmem:[%s717] sm:$0x1]
        %v720 = vlaneseq
        %v721 = vshrl.u32 %v720, 7
        %v722 = vsub.s32 0, %v721
        %v723 = vrot.slane %v718, %v722
        %725 = vmatprep.subr.mxu0 0.0
        %726 = vmatpush1.msra.mxu0 %v713
        %727 = vmatprep.subr.mxu0 0.0
        %728 = vmatpush1.msra.mxu0 %v714
        %729 = vmatprep.subr.mxu0 0.0
        %730 = vmatpush1.msra.mxu0 %v715
        %731 = vmatprep.subr.mxu0 0.0
        %732 = vmatpush1.msra.mxu0 %v716
        %733 = vmatprep.subr.mxu0 0.0
        %734 = vmatpush1.msra.mxu0 0.0
        %735 = vmatprep.subr.mxu0 0.0
        %736 = vmatpush1.msra.mxu0 0.0
        %737 = vmatprep.subr.mxu0 0.0
        %738 = vmatpush1.msra.mxu0 0.0
        %739 = vmatprep.subr.mxu0 0.0
        %740 = vmatpush1.msra.mxu0 0.0
        %741 = vmatprep.subr.mxu0 0.0
        %742 = vmatpush1.msra.mxu0 0.0
        %743 = vmatprep.subr.mxu0 0.0
        %744 = vmatpush1.msra.mxu0 0.0
        %745 = vmatprep.subr.mxu0 0.0
        %746 = vmatpush1.msra.mxu0 0.0
        %747 = vmatprep.subr.mxu0 0.0
        %748 = vmatpush1.msra.mxu0 0.0
        %749 = vmatprep.subr.mxu0 0.0
        %750 = vmatpush1.msra.mxu0 0.0
        %751 = vmatprep.subr.mxu0 0.0
        %752 = vmatpush1.msra.mxu0 0.0
        %753 = vmatprep.subr.mxu0 0.0
        %754 = vmatpush1.msra.mxu0 0.0
        %755 = vmatprep.subr.mxu0 0.0
        %756 = vmatpush1.msra.mxu0 0.0
        %757 = vmatprep.subr.mxu0 0.0
        %758 = vmatpush1.msra.mxu0 0.0
        %759 = vmatprep.subr.mxu0 0.0
        %760 = vmatpush1.msra.mxu0 0.0
        %761 = vmatprep.subr.mxu0 0.0
        %762 = vmatpush1.msra.mxu0 0.0
        %763 = vmatprep.subr.mxu0 0.0
        %764 = vmatpush1.msra.mxu0 0.0
        %765 = vmatprep.subr.mxu0 0.0
        %766 = vmatpush1.msra.mxu0 0.0
        %767 = vmatprep.subr.mxu0 0.0
        %768 = vmatpush1.msra.mxu0 0.0
        %769 = vmatprep.subr.mxu0 0.0
        %770 = vmatpush1.msra.mxu0 0.0
        %771 = vmatprep.subr.mxu0 0.0
        %772 = vmatpush1.msra.mxu0 0.0
        %773 = vmatprep.subr.mxu0 0.0
        %774 = vmatpush1.msra.mxu0 0.0
        %775 = vmatprep.subr.mxu0 0.0
        %776 = vmatpush1.msra.mxu0 0.0
        %777 = vmatprep.subr.mxu0 0.0
        %778 = vmatpush1.msra.mxu0 0.0
        %779 = vmatprep.subr.mxu0 0.0
        %780 = vmatpush1.msra.mxu0 0.0
        %781 = vmatprep.subr.mxu0 0.0
        %782 = vmatpush1.msra.mxu0 0.0
        %783 = vmatprep.subr.mxu0 0.0
        %784 = vmatpush1.msra.mxu0 0.0
        %785 = vmatprep.subr.mxu0 0.0
        %786 = vmatpush1.msra.mxu0 0.0
        %787 = vmatprep.subr.mxu0 0.0
        %788 = vmatpush1.msra.mxu0 0.0
        %789 = vmatprep.mubr.f32.mxu0 0.0
        %790 = vmatmul.mubr.f32.gmra.mrb[0].mxu0 %v557
        %v791 = vpop.f32.mrb[0].mxu0
        %v792 = vadd.f32 %v723, %v791
        %v793 = vpop.f32.mrb[0].mxu0
        %794 = vdwg.mxu0
        %796 = vrot.lane.b32.xlu0 %v626, 120
        %v797 = vpop.permute.xlu0 %796
        %799 = vrot.lane.b32.xlu0 %v626, 112
        %v800 = vpop.permute.xlu0 %799
        %802 = vrot.lane.b32.xlu0 %v626, 104
        %v803 = vpop.permute.xlu0 %802
        %v805 = vcombine.low %v626, %v800
        %v806 = vcombine.high %v626, %v800
        %v808 = vunpack.c.l.s4 1983009808
        %v809 = vunpack.c.0.s8 %v808
        %v810 = vlaneseq
        %v811 = vshrl.u32 %v810, 7
        %v812 = vsub.s32 %v809, %v811
        %v813 = vrot.slane %v805, %v812
        %v815 = vunpack.c.l.s4 1983009808
        %v816 = vunpack.c.0.s8 %v815
        %v817 = vlaneseq
        %v818 = vshrl.u32 %v817, 7
        %v819 = vsub.s32 %v816, %v818
        %v820 = vrot.slane %v806, %v819
        %v821 = vcombine.low %v797, %v803
        %v822 = vcombine.high %v797, %v803
        %v824 = vunpack.c.l.s4 1983009808
        %v825 = vunpack.c.0.s8 %v824
        %v826 = vlaneseq
        %v827 = vshrl.u32 %v826, 7
        %v828 = vsub.s32 %v825, %v827
        %v829 = vrot.slane %v821, %v828
        %v831 = vunpack.c.l.s4 1983009808
        %v832 = vunpack.c.0.s8 %v831
        %v833 = vlaneseq
        %v834 = vshrl.u32 %v833, 7
        %v835 = vsub.s32 %v832, %v834
        %v836 = vrot.slane %v822, %v835
        %v837 = vcombine.low %v813, %v829
        %v838 = vcombine.high %v813, %v829
        %v840 = vunpack.c.l.s4 1934713408
        %v841 = vunpack.c.0.s8 %v840
        %v842 = vlaneseq
        %v843 = vshrl.u32 %v842, 7
        %v844 = vsub.s32 %v841, %v843
        %v845 = vrot.slane %v837, %v844
        %v847 = vunpack.c.l.s4 1934713408
        %v848 = vunpack.c.0.s8 %v847
        %v849 = vlaneseq
        %v850 = vshrl.u32 %v849, 7
        %v851 = vsub.s32 %v848, %v850
        %v852 = vrot.slane %v838, %v851
        %v853 = vcombine.low %v820, %v836
        %v854 = vcombine.high %v820, %v836
        %v856 = vunpack.c.l.s4 1934713408
        %v857 = vunpack.c.0.s8 %v856
        %v858 = vlaneseq
        %v859 = vshrl.u32 %v858, 7
        %v860 = vsub.s32 %v857, %v859
        %v861 = vrot.slane %v853, %v860
        %v863 = vunpack.c.l.s4 1934713408
        %v864 = vunpack.c.0.s8 %v863
        %v865 = vlaneseq
        %v866 = vshrl.u32 %v865, 7
        %v867 = vsub.s32 %v864, %v866
        %v868 = vrot.slane %v854, %v867
        %v869 = vcombine.high %v845, 0.0
        %v870 = vcombine.high %v852, 0.0
        %v871 = vcombine.high %v861, 0.0
        %v872 = vcombine.high %v868, 0.0
        %v873 = vcombine.low %v845, %v852
        %v875 = vunpack.c.l.s4 1983009808
        %v876 = vunpack.c.0.s8 %v875
        %v877 = vlaneseq
        %v878 = vshrl.u32 %v877, 7
        %v879 = vsub.s32 %v876, %v878
        %v880 = vrot.slane %v873, %v879
        %v881 = vcombine.low %v869, %v870
        %v883 = vunpack.c.l.s4 1983009808
        %v884 = vunpack.c.0.s8 %v883
        %v885 = vlaneseq
        %v886 = vshrl.u32 %v885, 7
        %v887 = vsub.s32 %v884, %v886
        %v888 = vrot.slane %v881, %v887
        %v889 = vcombine.low %v861, %v868
        %v891 = vunpack.c.l.s4 1983009808
        %v892 = vunpack.c.0.s8 %v891
        %v893 = vlaneseq
        %v894 = vshrl.u32 %v893, 7
        %v895 = vsub.s32 %v892, %v894
        %v896 = vrot.slane %v889, %v895
        %v897 = vcombine.low %v871, %v872
        %v899 = vunpack.c.l.s4 1983009808
        %v900 = vunpack.c.0.s8 %v899
        %v901 = vlaneseq
        %v902 = vshrl.u32 %v901, 7
        %v903 = vsub.s32 %v900, %v902
        %v904 = vrot.slane %v897, %v903
        %v905 = vcombine.low %v880, %v888
        %v906 = vcombine.high %v880, %v888
        %v908 = vunpack.c.l.s4 1934713408
        %v909 = vunpack.c.0.s8 %v908
        %v910 = vlaneseq
        %v911 = vshrl.u32 %v910, 7
        %v912 = vsub.s32 %v909, %v911
        %v913 = vrot.slane %v905, %v912
        %v915 = vunpack.c.l.s4 1934713408
        %v916 = vunpack.c.0.s8 %v915
        %v917 = vlaneseq
        %v918 = vshrl.u32 %v917, 7
        %v919 = vsub.s32 %v916, %v918
        %v920 = vrot.slane %v906, %v919
        %v921 = vcombine.low %v896, %v904
        %v922 = vcombine.high %v896, %v904
        %v924 = vunpack.c.l.s4 1934713408
        %v925 = vunpack.c.0.s8 %v924
        %v926 = vlaneseq
        %v927 = vshrl.u32 %v926, 7
        %v928 = vsub.s32 %v925, %v927
        %v929 = vrot.slane %v921, %v928
        %v931 = vunpack.c.l.s4 1934713408
        %v932 = vunpack.c.0.s8 %v931
        %v933 = vlaneseq
        %v934 = vshrl.u32 %v933, 7
        %v935 = vsub.s32 %v932, %v934
        %v936 = vrot.slane %v922, %v935
        %v937 = vcombine.low %v913, %v929
        %v938 = vcombine.high %v913, %v929
        %v939 = vcombine.low %v920, %v936
        %v940 = vcombine.high %v920, %v936
        %942 = vrot.lane.b32.xlu0 %v709, 120
        %v943 = vpop.permute.xlu0 %942
        %945 = vrot.lane.b32.xlu0 %v709, 112
        %v946 = vpop.permute.xlu0 %945
        %948 = vrot.lane.b32.xlu0 %v709, 104
        %v949 = vpop.permute.xlu0 %948
        %v951 = vcombine.low %v709, %v946
        %v952 = vcombine.high %v709, %v946
        %v954 = vunpack.c.l.s4 1983009808
        %v955 = vunpack.c.0.s8 %v954
        %v956 = vlaneseq
        %v957 = vshrl.u32 %v956, 7
        %v958 = vsub.s32 %v955, %v957
        %v959 = vrot.slane %v951, %v958
        %v961 = vunpack.c.l.s4 1983009808
        %v962 = vunpack.c.0.s8 %v961
        %v963 = vlaneseq
        %v964 = vshrl.u32 %v963, 7
        %v965 = vsub.s32 %v962, %v964
        %v966 = vrot.slane %v952, %v965
        %v967 = vcombine.low %v943, %v949
        %v968 = vcombine.high %v943, %v949
        %v970 = vunpack.c.l.s4 1983009808
        %v971 = vunpack.c.0.s8 %v970
        %v972 = vlaneseq
        %v973 = vshrl.u32 %v972, 7
        %v974 = vsub.s32 %v971, %v973
        %v975 = vrot.slane %v967, %v974
        %v977 = vunpack.c.l.s4 1983009808
        %v978 = vunpack.c.0.s8 %v977
        %v979 = vlaneseq
        %v980 = vshrl.u32 %v979, 7
        %v981 = vsub.s32 %v978, %v980
        %v982 = vrot.slane %v968, %v981
        %v983 = vcombine.low %v959, %v975
        %v984 = vcombine.high %v959, %v975
        %v986 = vunpack.c.l.s4 1934713408
        %v987 = vunpack.c.0.s8 %v986
        %v988 = vlaneseq
        %v989 = vshrl.u32 %v988, 7
        %v990 = vsub.s32 %v987, %v989
        %v991 = vrot.slane %v983, %v990
        %v993 = vunpack.c.l.s4 1934713408
        %v994 = vunpack.c.0.s8 %v993
        %v995 = vlaneseq
        %v996 = vshrl.u32 %v995, 7
        %v997 = vsub.s32 %v994, %v996
        %v998 = vrot.slane %v984, %v997
        %v999 = vcombine.low %v966, %v982
        %v1000 = vcombine.high %v966, %v982
        %v1002 = vunpack.c.l.s4 1934713408
        %v1003 = vunpack.c.0.s8 %v1002
        %v1004 = vlaneseq
        %v1005 = vshrl.u32 %v1004, 7
        %v1006 = vsub.s32 %v1003, %v1005
        %v1007 = vrot.slane %v999, %v1006
        %v1009 = vunpack.c.l.s4 1934713408
        %v1010 = vunpack.c.0.s8 %v1009
        %v1011 = vlaneseq
        %v1012 = vshrl.u32 %v1011, 7
        %v1013 = vsub.s32 %v1010, %v1012
        %v1014 = vrot.slane %v1000, %v1013
        %v1015 = vcombine.high %v991, 0.0
        %v1016 = vcombine.high %v998, 0.0
        %v1017 = vcombine.high %v1007, 0.0
        %v1018 = vcombine.high %v1014, 0.0
        %v1019 = vcombine.low %v991, %v998
        %v1021 = vunpack.c.l.s4 1983009808
        %v1022 = vunpack.c.0.s8 %v1021
        %v1023 = vlaneseq
        %v1024 = vshrl.u32 %v1023, 7
        %v1025 = vsub.s32 %v1022, %v1024
        %v1026 = vrot.slane %v1019, %v1025
        %v1027 = vcombine.low %v1015, %v1016
        %v1029 = vunpack.c.l.s4 1983009808
        %v1030 = vunpack.c.0.s8 %v1029
        %v1031 = vlaneseq
        %v1032 = vshrl.u32 %v1031, 7
        %v1033 = vsub.s32 %v1030, %v1032
        %v1034 = vrot.slane %v1027, %v1033
        %v1035 = vcombine.low %v1007, %v1014
        %v1037 = vunpack.c.l.s4 1983009808
        %v1038 = vunpack.c.0.s8 %v1037
        %v1039 = vlaneseq
        %v1040 = vshrl.u32 %v1039, 7
        %v1041 = vsub.s32 %v1038, %v1040
        %v1042 = vrot.slane %v1035, %v1041
        %v1043 = vcombine.low %v1017, %v1018
        %v1045 = vunpack.c.l.s4 1983009808
        %v1046 = vunpack.c.0.s8 %v1045
        %v1047 = vlaneseq
        %v1048 = vshrl.u32 %v1047, 7
        %v1049 = vsub.s32 %v1046, %v1048
        %v1050 = vrot.slane %v1043, %v1049
        %v1051 = vcombine.low %v1026, %v1034
        %v1052 = vcombine.high %v1026, %v1034
        %v1054 = vunpack.c.l.s4 1934713408
        %v1055 = vunpack.c.0.s8 %v1054
        %v1056 = vlaneseq
        %v1057 = vshrl.u32 %v1056, 7
        %v1058 = vsub.s32 %v1055, %v1057
        %v1059 = vrot.slane %v1051, %v1058
        %v1061 = vunpack.c.l.s4 1934713408
        %v1062 = vunpack.c.0.s8 %v1061
        %v1063 = vlaneseq
        %v1064 = vshrl.u32 %v1063, 7
        %v1065 = vsub.s32 %v1062, %v1064
        %v1066 = vrot.slane %v1052, %v1065
        %v1067 = vcombine.low %v1042, %v1050
        %v1068 = vcombine.high %v1042, %v1050
        %v1070 = vunpack.c.l.s4 1934713408
        %v1071 = vunpack.c.0.s8 %v1070
        %v1072 = vlaneseq
        %v1073 = vshrl.u32 %v1072, 7
        %v1074 = vsub.s32 %v1071, %v1073
        %v1075 = vrot.slane %v1067, %v1074
        %v1077 = vunpack.c.l.s4 1934713408
        %v1078 = vunpack.c.0.s8 %v1077
        %v1079 = vlaneseq
        %v1080 = vshrl.u32 %v1079, 7
        %v1081 = vsub.s32 %v1078, %v1080
        %v1082 = vrot.slane %v1068, %v1081
        %v1083 = vcombine.low %v1059, %v1075
        %v1084 = vcombine.high %v1059, %v1075
        %v1085 = vcombine.low %v1066, %v1082
        %v1086 = vcombine.high %v1066, %v1082
        %1088 = vrot.lane.b32.xlu0 %v792, 120
        %v1089 = vpop.permute.xlu0 %1088
        %1091 = vrot.lane.b32.xlu0 %v792, 112
        %v1092 = vpop.permute.xlu0 %1091
        %1094 = vrot.lane.b32.xlu0 %v792, 104
        %v1095 = vpop.permute.xlu0 %1094
        %v1097 = vcombine.low %v792, %v1092
        %v1098 = vcombine.high %v792, %v1092
        %v1100 = vunpack.c.l.s4 1983009808
        %v1101 = vunpack.c.0.s8 %v1100
        %v1102 = vlaneseq
        %v1103 = vshrl.u32 %v1102, 7
        %v1104 = vsub.s32 %v1101, %v1103
        %v1105 = vrot.slane %v1097, %v1104
        %v1107 = vunpack.c.l.s4 1983009808
        %v1108 = vunpack.c.0.s8 %v1107
        %v1109 = vlaneseq
        %v1110 = vshrl.u32 %v1109, 7
        %v1111 = vsub.s32 %v1108, %v1110
        %v1112 = vrot.slane %v1098, %v1111
        %v1113 = vcombine.low %v1089, %v1095
        %v1114 = vcombine.high %v1089, %v1095
        %v1116 = vunpack.c.l.s4 1983009808
        %v1117 = vunpack.c.0.s8 %v1116
        %v1118 = vlaneseq
        %v1119 = vshrl.u32 %v1118, 7
        %v1120 = vsub.s32 %v1117, %v1119
        %v1121 = vrot.slane %v1113, %v1120
        %v1123 = vunpack.c.l.s4 1983009808
        %v1124 = vunpack.c.0.s8 %v1123
        %v1125 = vlaneseq
        %v1126 = vshrl.u32 %v1125, 7
        %v1127 = vsub.s32 %v1124, %v1126
        %v1128 = vrot.slane %v1114, %v1127
        %v1129 = vcombine.low %v1105, %v1121
        %v1130 = vcombine.high %v1105, %v1121
        %v1132 = vunpack.c.l.s4 1934713408
        %v1133 = vunpack.c.0.s8 %v1132
        %v1134 = vlaneseq
        %v1135 = vshrl.u32 %v1134, 7
        %v1136 = vsub.s32 %v1133, %v1135
        %v1137 = vrot.slane %v1129, %v1136
        %v1139 = vunpack.c.l.s4 1934713408
        %v1140 = vunpack.c.0.s8 %v1139
        %v1141 = vlaneseq
        %v1142 = vshrl.u32 %v1141, 7
        %v1143 = vsub.s32 %v1140, %v1142
        %v1144 = vrot.slane %v1130, %v1143
        %v1145 = vcombine.low %v1112, %v1128
        %v1146 = vcombine.high %v1112, %v1128
        %v1148 = vunpack.c.l.s4 1934713408
        %v1149 = vunpack.c.0.s8 %v1148
        %v1150 = vlaneseq
        %v1151 = vshrl.u32 %v1150, 7
        %v1152 = vsub.s32 %v1149, %v1151
        %v1153 = vrot.slane %v1145, %v1152
        %v1155 = vunpack.c.l.s4 1934713408
        %v1156 = vunpack.c.0.s8 %v1155
        %v1157 = vlaneseq
        %v1158 = vshrl.u32 %v1157, 7
        %v1159 = vsub.s32 %v1156, %v1158
        %v1160 = vrot.slane %v1146, %v1159
        %v1161 = vcombine.high %v1137, 0.0
        %v1162 = vcombine.high %v1144, 0.0
        %v1163 = vcombine.high %v1153, 0.0
        %v1164 = vcombine.high %v1160, 0.0
        %v1165 = vcombine.low %v1137, %v1144
        %v1167 = vunpack.c.l.s4 1983009808
        %v1168 = vunpack.c.0.s8 %v1167
        %v1169 = vlaneseq
        %v1170 = vshrl.u32 %v1169, 7
        %v1171 = vsub.s32 %v1168, %v1170
        %v1172 = vrot.slane %v1165, %v1171
        %v1173 = vcombine.low %v1161, %v1162
        %v1175 = vunpack.c.l.s4 1983009808
        %v1176 = vunpack.c.0.s8 %v1175
        %v1177 = vlaneseq
        %v1178 = vshrl.u32 %v1177, 7
        %v1179 = vsub.s32 %v1176, %v1178
        %v1180 = vrot.slane %v1173, %v1179
        %v1181 = vcombine.low %v1153, %v1160
        %v1183 = vunpack.c.l.s4 1983009808
        %v1184 = vunpack.c.0.s8 %v1183
        %v1185 = vlaneseq
        %v1186 = vshrl.u32 %v1185, 7
        %v1187 = vsub.s32 %v1184, %v1186
        %v1188 = vrot.slane %v1181, %v1187
        %v1189 = vcombine.low %v1163, %v1164
        %v1191 = vunpack.c.l.s4 1983009808
        %v1192 = vunpack.c.0.s8 %v1191
        %v1193 = vlaneseq
        %v1194 = vshrl.u32 %v1193, 7
        %v1195 = vsub.s32 %v1192, %v1194
        %v1196 = vrot.slane %v1189, %v1195
        %v1197 = vcombine.low %v1172, %v1180
        %v1198 = vcombine.high %v1172, %v1180
        %v1200 = vunpack.c.l.s4 1934713408
        %v1201 = vunpack.c.0.s8 %v1200
        %v1202 = vlaneseq
        %v1203 = vshrl.u32 %v1202, 7
        %v1204 = vsub.s32 %v1201, %v1203
        %v1205 = vrot.slane %v1197, %v1204
        %v1207 = vunpack.c.l.s4 1934713408
        %v1208 = vunpack.c.0.s8 %v1207
        %v1209 = vlaneseq
        %v1210 = vshrl.u32 %v1209, 7
        %v1211 = vsub.s32 %v1208, %v1210
        %v1212 = vrot.slane %v1198, %v1211
        %v1213 = vcombine.low %v1188, %v1196
        %v1214 = vcombine.high %v1188, %v1196
        %v1216 = vunpack.c.l.s4 1934713408
        %v1217 = vunpack.c.0.s8 %v1216
        %v1218 = vlaneseq
        %v1219 = vshrl.u32 %v1218, 7
        %v1220 = vsub.s32 %v1217, %v1219
        %v1221 = vrot.slane %v1213, %v1220
        %v1223 = vunpack.c.l.s4 1934713408
        %v1224 = vunpack.c.0.s8 %v1223
        %v1225 = vlaneseq
        %v1226 = vshrl.u32 %v1225, 7
        %v1227 = vsub.s32 %v1224, %v1226
        %v1228 = vrot.slane %v1214, %v1227
        %v1229 = vcombine.low %v1205, %v1221
        %v1230 = vcombine.high %v1205, %v1221
        %v1231 = vcombine.low %v1212, %v1228
        %v1232 = vcombine.high %v1212, %v1228
        %vm1233 = vcmask 64512
        %v1235 = vsel %vm1233, %v937, 0
        %v1238 = vsel %vm1233, %v1083, 0
        %1240 = vmatprep.subr.mxu0 0.0
        %1241 = vmatpush1.xpose.msra.mxu0 %v1238
        %1242 = vmatprep.subr.mxu0 0.0
        %1243 = vmatpush1.xpose.msra.mxu0 0.0
        %1244 = vmatprep.subr.mxu0 0.0
        %1245 = vmatpush1.xpose.msra.mxu0 0.0
        %1246 = vmatprep.subr.mxu0 0.0
        %1247 = vmatpush1.xpose.msra.mxu0 0.0
        %1248 = vmatprep.subr.mxu0 0.0
        %1249 = vmatpush1.xpose.msra.mxu0 0.0
        %1250 = vmatprep.subr.mxu0 0.0
        %1251 = vmatpush1.xpose.msra.mxu0 0.0
        %1252 = vmatprep.subr.mxu0 0.0
        %1253 = vmatpush1.xpose.msra.mxu0 0.0
        %1254 = vmatprep.subr.mxu0 0.0
        %1255 = vmatpush1.xpose.msra.mxu0 0.0
        %1256 = vmatprep.subr.mxu0 0.0
        %1257 = vmatpush1.xpose.msra.mxu0 0.0
        %1258 = vmatprep.subr.mxu0 0.0
        %1259 = vmatpush1.xpose.msra.mxu0 0.0
        %1260 = vmatprep.subr.mxu0 0.0
        %1261 = vmatpush1.xpose.msra.mxu0 0.0
        %1262 = vmatprep.subr.mxu0 0.0
        %1263 = vmatpush1.xpose.msra.mxu0 0.0
        %1264 = vmatprep.subr.mxu0 0.0
        %1265 = vmatpush1.xpose.msra.mxu0 0.0
        %1266 = vmatprep.subr.mxu0 0.0
        %1267 = vmatpush1.xpose.msra.mxu0 0.0
        %1268 = vmatprep.subr.mxu0 0.0
        %1269 = vmatpush1.xpose.msra.mxu0 0.0
        %1270 = vmatprep.subr.mxu0 0.0
        %1271 = vmatpush1.xpose.msra.mxu0 0.0
        %1272 = vmatprep.subr.mxu0 0.0
        %1273 = vmatpush1.xpose.msra.mxu0 0.0
        %1274 = vmatprep.subr.mxu0 0.0
        %1275 = vmatpush1.xpose.msra.mxu0 0.0
        %1276 = vmatprep.subr.mxu0 0.0
        %1277 = vmatpush1.xpose.msra.mxu0 0.0
        %1278 = vmatprep.subr.mxu0 0.0
        %1279 = vmatpush1.xpose.msra.mxu0 0.0
        %1280 = vmatprep.subr.mxu0 0.0
        %1281 = vmatpush1.xpose.msra.mxu0 0.0
        %1282 = vmatprep.subr.mxu0 0.0
        %1283 = vmatpush1.xpose.msra.mxu0 0.0
        %1284 = vmatprep.subr.mxu0 0.0
        %1285 = vmatpush1.xpose.msra.mxu0 0.0
        %1286 = vmatprep.subr.mxu0 0.0
        %1287 = vmatpush1.xpose.msra.mxu0 0.0
        %1288 = vmatprep.subr.mxu0 0.0
        %1289 = vmatpush1.xpose.msra.mxu0 0.0
        %1290 = vmatprep.subr.mxu0 0.0
        %1291 = vmatpush1.xpose.msra.mxu0 0.0
        %1292 = vmatprep.subr.mxu0 0.0
        %1293 = vmatpush1.xpose.msra.mxu0 0.0
        %1294 = vmatprep.subr.mxu0 0.0
        %1295 = vmatpush1.xpose.msra.mxu0 0.0
        %1296 = vmatprep.subr.mxu0 0.0
        %1297 = vmatpush1.xpose.msra.mxu0 0.0
        %1298 = vmatprep.subr.mxu0 0.0
        %1299 = vmatpush1.xpose.msra.mxu0 0.0
        %1300 = vmatprep.subr.mxu0 0.0
        %1301 = vmatpush1.xpose.msra.mxu0 0.0
        %1302 = vmatprep.subr.mxu0 0.0
        %1303 = vmatpush1.xpose.msra.mxu0 0.0
        %1304 = vmatprep.mubr.f32.mxu0 0.0
        %1305 = vmatmul.mubr.f32.gmra.mrb[0].mxu0 %v1235
        %v1306 = vpop.f32.mrb[0].mxu0
        %v1307 = vadd.f32 0.0, %v1306
        %v1308 = vpop.f32.mrb[0].mxu0
        %1309 = vdwg.mxu0
        %v1311 = vsel %vm1233, %v938, 0
        %v1314 = vsel %vm1233, %v1084, 0
        %1316 = vmatprep.subr.mxu0 0.0
        %1317 = vmatpush1.xpose.msra.mxu0 %v1314
        %1318 = vmatprep.subr.mxu0 0.0
        %1319 = vmatpush1.xpose.msra.mxu0 0.0
        %1320 = vmatprep.subr.mxu0 0.0
        %1321 = vmatpush1.xpose.msra.mxu0 0.0
        %1322 = vmatprep.subr.mxu0 0.0
        %1323 = vmatpush1.xpose.msra.mxu0 0.0
        %1324 = vmatprep.subr.mxu0 0.0
        %1325 = vmatpush1.xpose.msra.mxu0 0.0
        %1326 = vmatprep.subr.mxu0 0.0
        %1327 = vmatpush1.xpose.msra.mxu0 0.0
        %1328 = vmatprep.subr.mxu0 0.0
        %1329 = vmatpush1.xpose.msra.mxu0 0.0
        %1330 = vmatprep.subr.mxu0 0.0
        %1331 = vmatpush1.xpose.msra.mxu0 0.0
        %1332 = vmatprep.subr.mxu0 0.0
        %1333 = vmatpush1.xpose.msra.mxu0 0.0
        %1334 = vmatprep.subr.mxu0 0.0
        %1335 = vmatpush1.xpose.msra.mxu0 0.0
        %1336 = vmatprep.subr.mxu0 0.0
        %1337 = vmatpush1.xpose.msra.mxu0 0.0
        %1338 = vmatprep.subr.mxu0 0.0
        %1339 = vmatpush1.xpose.msra.mxu0 0.0
        %1340 = vmatprep.subr.mxu0 0.0
        %1341 = vmatpush1.xpose.msra.mxu0 0.0
        %1342 = vmatprep.subr.mxu0 0.0
        %1343 = vmatpush1.xpose.msra.mxu0 0.0
        %1344 = vmatprep.subr.mxu0 0.0
        %1345 = vmatpush1.xpose.msra.mxu0 0.0
        %1346 = vmatprep.subr.mxu0 0.0
        %1347 = vmatpush1.xpose.msra.mxu0 0.0
        %1348 = vmatprep.subr.mxu0 0.0
        %1349 = vmatpush1.xpose.msra.mxu0 0.0
        %1350 = vmatprep.subr.mxu0 0.0
        %1351 = vmatpush1.xpose.msra.mxu0 0.0
        %1352 = vmatprep.subr.mxu0 0.0
        %1353 = vmatpush1.xpose.msra.mxu0 0.0
        %1354 = vmatprep.subr.mxu0 0.0
        %1355 = vmatpush1.xpose.msra.mxu0 0.0
        %1356 = vmatprep.subr.mxu0 0.0
        %1357 = vmatpush1.xpose.msra.mxu0 0.0
        %1358 = vmatprep.subr.mxu0 0.0
        %1359 = vmatpush1.xpose.msra.mxu0 0.0
        %1360 = vmatprep.subr.mxu0 0.0
        %1361 = vmatpush1.xpose.msra.mxu0 0.0
        %1362 = vmatprep.subr.mxu0 0.0
        %1363 = vmatpush1.xpose.msra.mxu0 0.0
        %1364 = vmatprep.subr.mxu0 0.0
        %1365 = vmatpush1.xpose.msra.mxu0 0.0
        %1366 = vmatprep.subr.mxu0 0.0
        %1367 = vmatpush1.xpose.msra.mxu0 0.0
        %1368 = vmatprep.subr.mxu0 0.0
        %1369 = vmatpush1.xpose.msra.mxu0 0.0
        %1370 = vmatprep.subr.mxu0 0.0
        %1371 = vmatpush1.xpose.msra.mxu0 0.0
        %1372 = vmatprep.subr.mxu0 0.0
        %1373 = vmatpush1.xpose.msra.mxu0 0.0
        %1374 = vmatprep.subr.mxu0 0.0
        %1375 = vmatpush1.xpose.msra.mxu0 0.0
        %1376 = vmatprep.subr.mxu0 0.0
        %1377 = vmatpush1.xpose.msra.mxu0 0.0
        %1378 = vmatprep.subr.mxu0 0.0
        %1379 = vmatpush1.xpose.msra.mxu0 0.0
        %1380 = vmatprep.mubr.f32.mxu0 0.0
        %1381 = vmatmul.mubr.f32.gmra.mrb[0].mxu0 %v1311
        %v1382 = vpop.f32.mrb[0].mxu0
        %v1383 = vadd.f32 0.0, %v1382
        %v1384 = vpop.f32.mrb[0].mxu0
        %1385 = vdwg.mxu0
        %v1387 = vsel %vm1233, %v939, 0
        %v1390 = vsel %vm1233, %v1085, 0
        %1392 = vmatprep.subr.mxu0 0.0
        %1393 = vmatpush1.xpose.msra.mxu0 %v1390
        %1394 = vmatprep.subr.mxu0 0.0
        %1395 = vmatpush1.xpose.msra.mxu0 0.0
        %1396 = vmatprep.subr.mxu0 0.0
        %1397 = vmatpush1.xpose.msra.mxu0 0.0
        %1398 = vmatprep.subr.mxu0 0.0
        %1399 = vmatpush1.xpose.msra.mxu0 0.0
        %1400 = vmatprep.subr.mxu0 0.0
        %1401 = vmatpush1.xpose.msra.mxu0 0.0
        %1402 = vmatprep.subr.mxu0 0.0
        %1403 = vmatpush1.xpose.msra.mxu0 0.0
        %1404 = vmatprep.subr.mxu0 0.0
        %1405 = vmatpush1.xpose.msra.mxu0 0.0
        %1406 = vmatprep.subr.mxu0 0.0
        %1407 = vmatpush1.xpose.msra.mxu0 0.0
        %1408 = vmatprep.subr.mxu0 0.0
        %1409 = vmatpush1.xpose.msra.mxu0 0.0
        %1410 = vmatprep.subr.mxu0 0.0
        %1411 = vmatpush1.xpose.msra.mxu0 0.0
        %1412 = vmatprep.subr.mxu0 0.0
        %1413 = vmatpush1.xpose.msra.mxu0 0.0
        %1414 = vmatprep.subr.mxu0 0.0
        %1415 = vmatpush1.xpose.msra.mxu0 0.0
        %1416 = vmatprep.subr.mxu0 0.0
        %1417 = vmatpush1.xpose.msra.mxu0 0.0
        %1418 = vmatprep.subr.mxu0 0.0
        %1419 = vmatpush1.xpose.msra.mxu0 0.0
        %1420 = vmatprep.subr.mxu0 0.0
        %1421 = vmatpush1.xpose.msra.mxu0 0.0
        %1422 = vmatprep.subr.mxu0 0.0
        %1423 = vmatpush1.xpose.msra.mxu0 0.0
        %1424 = vmatprep.subr.mxu0 0.0
        %1425 = vmatpush1.xpose.msra.mxu0 0.0
        %1426 = vmatprep.subr.mxu0 0.0
        %1427 = vmatpush1.xpose.msra.mxu0 0.0
        %1428 = vmatprep.subr.mxu0 0.0
        %1429 = vmatpush1.xpose.msra.mxu0 0.0
        %1430 = vmatprep.subr.mxu0 0.0
        %1431 = vmatpush1.xpose.msra.mxu0 0.0
        %1432 = vmatprep.subr.mxu0 0.0
        %1433 = vmatpush1.xpose.msra.mxu0 0.0
        %1434 = vmatprep.subr.mxu0 0.0
        %1435 = vmatpush1.xpose.msra.mxu0 0.0
        %1436 = vmatprep.subr.mxu0 0.0
        %1437 = vmatpush1.xpose.msra.mxu0 0.0
        %1438 = vmatprep.subr.mxu0 0.0
        %1439 = vmatpush1.xpose.msra.mxu0 0.0
        %1440 = vmatprep.subr.mxu0 0.0
        %1441 = vmatpush1.xpose.msra.mxu0 0.0
        %1442 = vmatprep.subr.mxu0 0.0
        %1443 = vmatpush1.xpose.msra.mxu0 0.0
        %1444 = vmatprep.subr.mxu0 0.0
        %1445 = vmatpush1.xpose.msra.mxu0 0.0
        %1446 = vmatprep.subr.mxu0 0.0
        %1447 = vmatpush1.xpose.msra.mxu0 0.0
        %1448 = vmatprep.subr.mxu0 0.0
        %1449 = vmatpush1.xpose.msra.mxu0 0.0
        %1450 = vmatprep.subr.mxu0 0.0
        %1451 = vmatpush1.xpose.msra.mxu0 0.0
        %1452 = vmatprep.subr.mxu0 0.0
        %1453 = vmatpush1.xpose.msra.mxu0 0.0
        %1454 = vmatprep.subr.mxu0 0.0
        %1455 = vmatpush1.xpose.msra.mxu0 0.0
        %1456 = vmatprep.mubr.f32.mxu0 0.0
        %1457 = vmatmul.mubr.f32.gmra.mrb[0].mxu0 %v1387
        %v1458 = vpop.f32.mrb[0].mxu0
        %v1459 = vadd.f32 0.0, %v1458
        %v1460 = vpop.f32.mrb[0].mxu0
        %1461 = vdwg.mxu0
        %v1463 = vsel %vm1233, %v940, 0
        %v1466 = vsel %vm1233, %v1086, 0
        %1468 = vmatprep.subr.mxu0 0.0
        %1469 = vmatpush1.xpose.msra.mxu0 %v1466
        %1470 = vmatprep.subr.mxu0 0.0
        %1471 = vmatpush1.xpose.msra.mxu0 0.0
        %1472 = vmatprep.subr.mxu0 0.0
        %1473 = vmatpush1.xpose.msra.mxu0 0.0
        %1474 = vmatprep.subr.mxu0 0.0
        %1475 = vmatpush1.xpose.msra.mxu0 0.0
        %1476 = vmatprep.subr.mxu0 0.0
        %1477 = vmatpush1.xpose.msra.mxu0 0.0
        %1478 = vmatprep.subr.mxu0 0.0
        %1479 = vmatpush1.xpose.msra.mxu0 0.0
        %1480 = vmatprep.subr.mxu0 0.0
        %1481 = vmatpush1.xpose.msra.mxu0 0.0
        %1482 = vmatprep.subr.mxu0 0.0
        %1483 = vmatpush1.xpose.msra.mxu0 0.0
        %1484 = vmatprep.subr.mxu0 0.0
        %1485 = vmatpush1.xpose.msra.mxu0 0.0
        %1486 = vmatprep.subr.mxu0 0.0
        %1487 = vmatpush1.xpose.msra.mxu0 0.0
        %1488 = vmatprep.subr.mxu0 0.0
        %1489 = vmatpush1.xpose.msra.mxu0 0.0
        %1490 = vmatprep.subr.mxu0 0.0
        %1491 = vmatpush1.xpose.msra.mxu0 0.0
        %1492 = vmatprep.subr.mxu0 0.0
        %1493 = vmatpush1.xpose.msra.mxu0 0.0
        %1494 = vmatprep.subr.mxu0 0.0
        %1495 = vmatpush1.xpose.msra.mxu0 0.0
        %1496 = vmatprep.subr.mxu0 0.0
        %1497 = vmatpush1.xpose.msra.mxu0 0.0
        %1498 = vmatprep.subr.mxu0 0.0
        %1499 = vmatpush1.xpose.msra.mxu0 0.0
        %1500 = vmatprep.subr.mxu0 0.0
        %1501 = vmatpush1.xpose.msra.mxu0 0.0
        %1502 = vmatprep.subr.mxu0 0.0
        %1503 = vmatpush1.xpose.msra.mxu0 0.0
        %1504 = vmatprep.subr.mxu0 0.0
        %1505 = vmatpush1.xpose.msra.mxu0 0.0
        %1506 = vmatprep.subr.mxu0 0.0
        %1507 = vmatpush1.xpose.msra.mxu0 0.0
        %1508 = vmatprep.subr.mxu0 0.0
        %1509 = vmatpush1.xpose.msra.mxu0 0.0
        %1510 = vmatprep.subr.mxu0 0.0
        %1511 = vmatpush1.xpose.msra.mxu0 0.0
        %1512 = vmatprep.subr.mxu0 0.0
        %1513 = vmatpush1.xpose.msra.mxu0 0.0
        %1514 = vmatprep.subr.mxu0 0.0
        %1515 = vmatpush1.xpose.msra.mxu0 0.0
        %1516 = vmatprep.subr.mxu0 0.0
        %1517 = vmatpush1.xpose.msra.mxu0 0.0
        %1518 = vmatprep.subr.mxu0 0.0
        %1519 = vmatpush1.xpose.msra.mxu0 0.0
        %1520 = vmatprep.subr.mxu0 0.0
        %1521 = vmatpush1.xpose.msra.mxu0 0.0
        %1522 = vmatprep.subr.mxu0 0.0
        %1523 = vmatpush1.xpose.msra.mxu0 0.0
        %1524 = vmatprep.subr.mxu0 0.0
        %1525 = vmatpush1.xpose.msra.mxu0 0.0
        %1526 = vmatprep.subr.mxu0 0.0
        %1527 = vmatpush1.xpose.msra.mxu0 0.0
        %1528 = vmatprep.subr.mxu0 0.0
        %1529 = vmatpush1.xpose.msra.mxu0 0.0
        %1530 = vmatprep.subr.mxu0 0.0
        %1531 = vmatpush1.xpose.msra.mxu0 0.0
        %1532 = vmatprep.mubr.f32.mxu0 0.0
        %1533 = vmatmul.mubr.f32.gmra.mrb[0].mxu0 %v1463
        %v1534 = vpop.f32.mrb[0].mxu0
        %v1535 = vadd.f32 0.0, %v1534
        %v1536 = vpop.f32.mrb[0].mxu0
        %1537 = vdwg.mxu0
        %v1538 = vsel %vm1233, %v1307, -inf
        %1539 = vmax.xlane.f32.xlu0 %v1538
        %v1540 = vpop.xlane.xlu0 %1539
        %v1541 = vsel %vm1233, %v1383, -inf
        %1542 = vmax.xlane.f32.xlu0 %v1541
        %v1543 = vpop.xlane.xlu0 %1542
        %v1544 = vsel %vm1233, %v1459, -inf
        %1545 = vmax.xlane.f32.xlu0 %v1544
        %v1546 = vpop.xlane.xlu0 %1545
        %v1547 = vsel %vm1233, %v1535, -inf
        %1548 = vmax.xlane.f32.xlu0 %v1547
        %v1549 = vpop.xlane.xlu0 %1548
        %v1550 = vsub.f32 %v1307, %v1540
        %v1551 = vsub.f32 %v1383, %v1543
        %v1552 = vsub.f32 %v1459, %v1546
        %v1553 = vsub.f32 %v1535, %v1549
        %v1554 = vmul.f32 %v1550, 1.442695
        %v1555 = vpow.pop %v1554
        %v1556 = vmul.f32 %v1551, 1.442695
        %v1557 = vpow.pop %v1556
        %v1558 = vmul.f32 %v1552, 1.442695
        %v1559 = vpow.pop %v1558
        %v1560 = vmul.f32 %v1553, 1.442695
        %v1561 = vpow.pop %v1560
        %v1562 = vsel %vm1233, %v1555, 0.0
        %1563 = vadd.xlane.f32.xlu0 %v1562
        %v1564 = vpop.xlane.xlu0 %1563
        %v1565 = vsel %vm1233, %v1557, 0.0
        %1566 = vadd.xlane.f32.xlu0 %v1565
        %v1567 = vpop.xlane.xlu0 %1566
        %v1568 = vsel %vm1233, %v1559, 0.0
        %1569 = vadd.xlane.f32.xlu0 %v1568
        %v1570 = vpop.xlane.xlu0 %1569
        %v1571 = vsel %vm1233, %v1561, 0.0
        %1572 = vadd.xlane.f32.xlu0 %v1571
        %v1573 = vpop.xlane.xlu0 %1572
        %v1574 = vrcp.pop %v1564
        %v1575 = vrcp.pop %v1567
        %v1576 = vrcp.pop %v1570
        %v1577 = vrcp.pop %v1573
        %v1578 = vmul.f32 %v1555, %v1574
        %v1579 = vmul.f32 %v1557, %v1575
        %v1580 = vmul.f32 %v1559, %v1576
        %v1581 = vmul.f32 %v1561, %v1577
        %v1583 = vsel %vm1233, %v1578, 0
        %1585 = vmatprep.subr.mxu0 0.0
        %1586 = vmatpush1.msra.mxu0 %v1229
        %1587 = vmatprep.subr.mxu0 0.0
        %1588 = vmatpush1.msra.mxu0 0.0
        %1589 = vmatprep.subr.mxu0 0.0
        %1590 = vmatpush1.msra.mxu0 0.0
        %1591 = vmatprep.subr.mxu0 0.0
        %1592 = vmatpush1.msra.mxu0 0.0
        %1593 = vmatprep.subr.mxu0 0.0
        %1594 = vmatpush1.msra.mxu0 0.0
        %1595 = vmatprep.subr.mxu0 0.0
        %1596 = vmatpush1.msra.mxu0 0.0
        %1597 = vmatprep.subr.mxu0 0.0
        %1598 = vmatpush1.msra.mxu0 0.0
        %1599 = vmatprep.subr.mxu0 0.0
        %1600 = vmatpush1.msra.mxu0 0.0
        %1601 = vmatprep.subr.mxu0 0.0
        %1602 = vmatpush1.msra.mxu0 0.0
        %1603 = vmatprep.subr.mxu0 0.0
        %1604 = vmatpush1.msra.mxu0 0.0
        %1605 = vmatprep.subr.mxu0 0.0
        %1606 = vmatpush1.msra.mxu0 0.0
        %1607 = vmatprep.subr.mxu0 0.0
        %1608 = vmatpush1.msra.mxu0 0.0
        %1609 = vmatprep.subr.mxu0 0.0
        %1610 = vmatpush1.msra.mxu0 0.0
        %1611 = vmatprep.subr.mxu0 0.0
        %1612 = vmatpush1.msra.mxu0 0.0
        %1613 = vmatprep.subr.mxu0 0.0
        %1614 = vmatpush1.msra.mxu0 0.0
        %1615 = vmatprep.subr.mxu0 0.0
        %1616 = vmatpush1.msra.mxu0 0.0
        %1617 = vmatprep.subr.mxu0 0.0
        %1618 = vmatpush1.msra.mxu0 0.0
        %1619 = vmatprep.subr.mxu0 0.0
        %1620 = vmatpush1.msra.mxu0 0.0
        %1621 = vmatprep.subr.mxu0 0.0
        %1622 = vmatpush1.msra.mxu0 0.0
        %1623 = vmatprep.subr.mxu0 0.0
        %1624 = vmatpush1.msra.mxu0 0.0
        %1625 = vmatprep.subr.mxu0 0.0
        %1626 = vmatpush1.msra.mxu0 0.0
        %1627 = vmatprep.subr.mxu0 0.0
        %1628 = vmatpush1.msra.mxu0 0.0
        %1629 = vmatprep.subr.mxu0 0.0
        %1630 = vmatpush1.msra.mxu0 0.0
        %1631 = vmatprep.subr.mxu0 0.0
        %1632 = vmatpush1.msra.mxu0 0.0
        %1633 = vmatprep.subr.mxu0 0.0
        %1634 = vmatpush1.msra.mxu0 0.0
        %1635 = vmatprep.subr.mxu0 0.0
        %1636 = vmatpush1.msra.mxu0 0.0
        %1637 = vmatprep.subr.mxu0 0.0
        %1638 = vmatpush1.msra.mxu0 0.0
        %1639 = vmatprep.subr.mxu0 0.0
        %1640 = vmatpush1.msra.mxu0 0.0
        %1641 = vmatprep.subr.mxu0 0.0
        %1642 = vmatpush1.msra.mxu0 0.0
        %1643 = vmatprep.subr.mxu0 0.0
        %1644 = vmatpush1.msra.mxu0 0.0
        %1645 = vmatprep.subr.mxu0 0.0
        %1646 = vmatpush1.msra.mxu0 0.0
        %1647 = vmatprep.subr.mxu0 0.0
        %1648 = vmatpush1.msra.mxu0 0.0
        %1649 = vmatprep.mubr.f32.mxu0 0.0
        %1650 = vmatmul.mubr.f32.gmra.mrb[0].mxu0 %v1583
        %v1651 = vpop.f32.mrb[0].mxu0
        %v1652 = vadd.f32 0.0, %v1651
        %v1653 = vpop.f32.mrb[0].mxu0
        %1654 = vdwg.mxu0
        %v1656 = vsel %vm1233, %v1579, 0
        %1658 = vmatprep.subr.mxu0 0.0
        %1659 = vmatpush1.msra.mxu0 %v1230
        %1660 = vmatprep.subr.mxu0 0.0
        %1661 = vmatpush1.msra.mxu0 0.0
        %1662 = vmatprep.subr.mxu0 0.0
        %1663 = vmatpush1.msra.mxu0 0.0
        %1664 = vmatprep.subr.mxu0 0.0
        %1665 = vmatpush1.msra.mxu0 0.0
        %1666 = vmatprep.subr.mxu0 0.0
        %1667 = vmatpush1.msra.mxu0 0.0
        %1668 = vmatprep.subr.mxu0 0.0
        %1669 = vmatpush1.msra.mxu0 0.0
        %1670 = vmatprep.subr.mxu0 0.0
        %1671 = vmatpush1.msra.mxu0 0.0
        %1672 = vmatprep.subr.mxu0 0.0
        %1673 = vmatpush1.msra.mxu0 0.0
        %1674 = vmatprep.subr.mxu0 0.0
        %1675 = vmatpush1.msra.mxu0 0.0
        %1676 = vmatprep.subr.mxu0 0.0
        %1677 = vmatpush1.msra.mxu0 0.0
        %1678 = vmatprep.subr.mxu0 0.0
        %1679 = vmatpush1.msra.mxu0 0.0
        %1680 = vmatprep.subr.mxu0 0.0
        %1681 = vmatpush1.msra.mxu0 0.0
        %1682 = vmatprep.subr.mxu0 0.0
        %1683 = vmatpush1.msra.mxu0 0.0
        %1684 = vmatprep.subr.mxu0 0.0
        %1685 = vmatpush1.msra.mxu0 0.0
        %1686 = vmatprep.subr.mxu0 0.0
        %1687 = vmatpush1.msra.mxu0 0.0
        %1688 = vmatprep.subr.mxu0 0.0
        %1689 = vmatpush1.msra.mxu0 0.0
        %1690 = vmatprep.subr.mxu0 0.0
        %1691 = vmatpush1.msra.mxu0 0.0
        %1692 = vmatprep.subr.mxu0 0.0
        %1693 = vmatpush1.msra.mxu0 0.0
        %1694 = vmatprep.subr.mxu0 0.0
        %1695 = vmatpush1.msra.mxu0 0.0
        %1696 = vmatprep.subr.mxu0 0.0
        %1697 = vmatpush1.msra.mxu0 0.0
        %1698 = vmatprep.subr.mxu0 0.0
        %1699 = vmatpush1.msra.mxu0 0.0
        %1700 = vmatprep.subr.mxu0 0.0
        %1701 = vmatpush1.msra.mxu0 0.0
        %1702 = vmatprep.subr.mxu0 0.0
        %1703 = vmatpush1.msra.mxu0 0.0
        %1704 = vmatprep.subr.mxu0 0.0
        %1705 = vmatpush1.msra.mxu0 0.0
        %1706 = vmatprep.subr.mxu0 0.0
        %1707 = vmatpush1.msra.mxu0 0.0
        %1708 = vmatprep.subr.mxu0 0.0
        %1709 = vmatpush1.msra.mxu0 0.0
        %1710 = vmatprep.subr.mxu0 0.0
        %1711 = vmatpush1.msra.mxu0 0.0
        %1712 = vmatprep.subr.mxu0 0.0
        %1713 = vmatpush1.msra.mxu0 0.0
        %1714 = vmatprep.subr.mxu0 0.0
        %1715 = vmatpush1.msra.mxu0 0.0
        %1716 = vmatprep.subr.mxu0 0.0
        %1717 = vmatpush1.msra.mxu0 0.0
        %1718 = vmatprep.subr.mxu0 0.0
        %1719 = vmatpush1.msra.mxu0 0.0
        %1720 = vmatprep.subr.mxu0 0.0
        %1721 = vmatpush1.msra.mxu0 0.0
        %1722 = vmatprep.mubr.f32.mxu0 0.0
        %1723 = vmatmul.mubr.f32.gmra.mrb[0].mxu0 %v1656
        %v1724 = vpop.f32.mrb[0].mxu0
        %v1725 = vadd.f32 0.0, %v1724
        %v1726 = vpop.f32.mrb[0].mxu0
        %1727 = vdwg.mxu0
        %v1729 = vsel %vm1233, %v1580, 0
        %1731 = vmatprep.subr.mxu0 0.0
        %1732 = vmatpush1.msra.mxu0 %v1231
        %1733 = vmatprep.subr.mxu0 0.0
        %1734 = vmatpush1.msra.mxu0 0.0
        %1735 = vmatprep.subr.mxu0 0.0
        %1736 = vmatpush1.msra.mxu0 0.0
        %1737 = vmatprep.subr.mxu0 0.0
        %1738 = vmatpush1.msra.mxu0 0.0
        %1739 = vmatprep.subr.mxu0 0.0
        %1740 = vmatpush1.msra.mxu0 0.0
        %1741 = vmatprep.subr.mxu0 0.0
        %1742 = vmatpush1.msra.mxu0 0.0
        %1743 = vmatprep.subr.mxu0 0.0
        %1744 = vmatpush1.msra.mxu0 0.0
        %1745 = vmatprep.subr.mxu0 0.0
        %1746 = vmatpush1.msra.mxu0 0.0
        %1747 = vmatprep.subr.mxu0 0.0
        %1748 = vmatpush1.msra.mxu0 0.0
        %1749 = vmatprep.subr.mxu0 0.0
        %1750 = vmatpush1.msra.mxu0 0.0
        %1751 = vmatprep.subr.mxu0 0.0
        %1752 = vmatpush1.msra.mxu0 0.0
        %1753 = vmatprep.subr.mxu0 0.0
        %1754 = vmatpush1.msra.mxu0 0.0
        %1755 = vmatprep.subr.mxu0 0.0
        %1756 = vmatpush1.msra.mxu0 0.0
        %1757 = vmatprep.subr.mxu0 0.0
        %1758 = vmatpush1.msra.mxu0 0.0
        %1759 = vmatprep.subr.mxu0 0.0
        %1760 = vmatpush1.msra.mxu0 0.0
        %1761 = vmatprep.subr.mxu0 0.0
        %1762 = vmatpush1.msra.mxu0 0.0
        %1763 = vmatprep.subr.mxu0 0.0
        %1764 = vmatpush1.msra.mxu0 0.0
        %1765 = vmatprep.subr.mxu0 0.0
        %1766 = vmatpush1.msra.mxu0 0.0
        %1767 = vmatprep.subr.mxu0 0.0
        %1768 = vmatpush1.msra.mxu0 0.0
        %1769 = vmatprep.subr.mxu0 0.0
        %1770 = vmatpush1.msra.mxu0 0.0
        %1771 = vmatprep.subr.mxu0 0.0
        %1772 = vmatpush1.msra.mxu0 0.0
        %1773 = vmatprep.subr.mxu0 0.0
        %1774 = vmatpush1.msra.mxu0 0.0
        %1775 = vmatprep.subr.mxu0 0.0
        %1776 = vmatpush1.msra.mxu0 0.0
        %1777 = vmatprep.subr.mxu0 0.0
        %1778 = vmatpush1.msra.mxu0 0.0
        %1779 = vmatprep.subr.mxu0 0.0
        %1780 = vmatpush1.msra.mxu0 0.0
        %1781 = vmatprep.subr.mxu0 0.0
        %1782 = vmatpush1.msra.mxu0 0.0
        %1783 = vmatprep.subr.mxu0 0.0
        %1784 = vmatpush1.msra.mxu0 0.0
        %1785 = vmatprep.subr.mxu0 0.0
        %1786 = vmatpush1.msra.mxu0 0.0
        %1787 = vmatprep.subr.mxu0 0.0
        %1788 = vmatpush1.msra.mxu0 0.0
        %1789 = vmatprep.subr.mxu0 0.0
        %1790 = vmatpush1.msra.mxu0 0.0
        %1791 = vmatprep.subr.mxu0 0.0
        %1792 = vmatpush1.msra.mxu0 0.0
        %1793 = vmatprep.subr.mxu0 0.0
        %1794 = vmatpush1.msra.mxu0 0.0
        %1795 = vmatprep.mubr.f32.mxu0 0.0
        %1796 = vmatmul.mubr.f32.gmra.mrb[0].mxu0 %v1729
        %v1797 = vpop.f32.mrb[0].mxu0
        %v1798 = vadd.f32 0.0, %v1797
        %v1799 = vpop.f32.mrb[0].mxu0
        %1800 = vdwg.mxu0
        %v1802 = vsel %vm1233, %v1581, 0
        %1804 = vmatprep.subr.mxu0 0.0
        %1805 = vmatpush1.msra.mxu0 %v1232
        %1806 = vmatprep.subr.mxu0 0.0
        %1807 = vmatpush1.msra.mxu0 0.0
        %1808 = vmatprep.subr.mxu0 0.0
        %1809 = vmatpush1.msra.mxu0 0.0
        %1810 = vmatprep.subr.mxu0 0.0
        %1811 = vmatpush1.msra.mxu0 0.0
        %1812 = vmatprep.subr.mxu0 0.0
        %1813 = vmatpush1.msra.mxu0 0.0
        %1814 = vmatprep.subr.mxu0 0.0
        %1815 = vmatpush1.msra.mxu0 0.0
        %1816 = vmatprep.subr.mxu0 0.0
        %1817 = vmatpush1.msra.mxu0 0.0
        %1818 = vmatprep.subr.mxu0 0.0
        %1819 = vmatpush1.msra.mxu0 0.0
        %1820 = vmatprep.subr.mxu0 0.0
        %1821 = vmatpush1.msra.mxu0 0.0
        %1822 = vmatprep.subr.mxu0 0.0
        %1823 = vmatpush1.msra.mxu0 0.0
        %1824 = vmatprep.subr.mxu0 0.0
        %1825 = vmatpush1.msra.mxu0 0.0
        %1826 = vmatprep.subr.mxu0 0.0
        %1827 = vmatpush1.msra.mxu0 0.0
        %1828 = vmatprep.subr.mxu0 0.0
        %1829 = vmatpush1.msra.mxu0 0.0
        %1830 = vmatprep.subr.mxu0 0.0
        %1831 = vmatpush1.msra.mxu0 0.0
        %1832 = vmatprep.subr.mxu0 0.0
        %1833 = vmatpush1.msra.mxu0 0.0
        %1834 = vmatprep.subr.mxu0 0.0
        %1835 = vmatpush1.msra.mxu0 0.0
        %1836 = vmatprep.subr.mxu0 0.0
        %1837 = vmatpush1.msra.mxu0 0.0
        %1838 = vmatprep.subr.mxu0 0.0
        %1839 = vmatpush1.msra.mxu0 0.0
        %1840 = vmatprep.subr.mxu0 0.0
        %1841 = vmatpush1.msra.mxu0 0.0
        %1842 = vmatprep.subr.mxu0 0.0
        %1843 = vmatpush1.msra.mxu0 0.0
        %1844 = vmatprep.subr.mxu0 0.0
        %1845 = vmatpush1.msra.mxu0 0.0
        %1846 = vmatprep.subr.mxu0 0.0
        %1847 = vmatpush1.msra.mxu0 0.0
        %1848 = vmatprep.subr.mxu0 0.0
        %1849 = vmatpush1.msra.mxu0 0.0
        %1850 = vmatprep.subr.mxu0 0.0
        %1851 = vmatpush1.msra.mxu0 0.0
        %1852 = vmatprep.subr.mxu0 0.0
        %1853 = vmatpush1.msra.mxu0 0.0
        %1854 = vmatprep.subr.mxu0 0.0
        %1855 = vmatpush1.msra.mxu0 0.0
        %1856 = vmatprep.subr.mxu0 0.0
        %1857 = vmatpush1.msra.mxu0 0.0
        %1858 = vmatprep.subr.mxu0 0.0
        %1859 = vmatpush1.msra.mxu0 0.0
        %1860 = vmatprep.subr.mxu0 0.0
        %1861 = vmatpush1.msra.mxu0 0.0
        %1862 = vmatprep.subr.mxu0 0.0
        %1863 = vmatpush1.msra.mxu0 0.0
        %1864 = vmatprep.subr.mxu0 0.0
        %1865 = vmatpush1.msra.mxu0 0.0
        %1866 = vmatprep.subr.mxu0 0.0
        %1867 = vmatpush1.msra.mxu0 0.0
        %1868 = vmatprep.mubr.f32.mxu0 0.0
        %1869 = vmatmul.mubr.f32.gmra.mrb[0].mxu0 %v1802
        %v1870 = vpop.f32.mrb[0].mxu0
        %v1871 = vadd.f32 0.0, %v1870
        %v1872 = vpop.f32.mrb[0].mxu0
        %1873 = vdwg.mxu0
        %v1874 = vcombine.low %v1652, %v1798
        %v1875 = vcombine.high %v1652, %v1798
        %v1877 = vunpack.c.l.s4 1983009808
        %v1878 = vunpack.c.0.s8 %v1877
        %v1879 = vlaneseq
        %v1880 = vshrl.u32 %v1879, 7
        %v1881 = vsub.s32 %v1878, %v1880
        %v1882 = vrot.slane %v1874, %v1881
        %v1884 = vunpack.c.l.s4 1983009808
        %v1885 = vunpack.c.0.s8 %v1884
        %v1886 = vlaneseq
        %v1887 = vshrl.u32 %v1886, 7
        %v1888 = vsub.s32 %v1885, %v1887
        %v1889 = vrot.slane %v1875, %v1888
        %v1890 = vcombine.low %v1725, %v1871
        %v1891 = vcombine.high %v1725, %v1871
        %v1893 = vunpack.c.l.s4 1983009808
        %v1894 = vunpack.c.0.s8 %v1893
        %v1895 = vlaneseq
        %v1896 = vshrl.u32 %v1895, 7
        %v1897 = vsub.s32 %v1894, %v1896
        %v1898 = vrot.slane %v1890, %v1897
        %v1900 = vunpack.c.l.s4 1983009808
        %v1901 = vunpack.c.0.s8 %v1900
        %v1902 = vlaneseq
        %v1903 = vshrl.u32 %v1902, 7
        %v1904 = vsub.s32 %v1901, %v1903
        %v1905 = vrot.slane %v1891, %v1904
        %v1906 = vcombine.low %v1882, %v1898
        %v1907 = vcombine.high %v1882, %v1898
        %v1909 = vunpack.c.l.s4 1934713408
        %v1910 = vunpack.c.0.s8 %v1909
        %v1911 = vlaneseq
        %v1912 = vshrl.u32 %v1911, 7
        %v1913 = vsub.s32 %v1910, %v1912
        %v1914 = vrot.slane %v1906, %v1913
        %v1916 = vunpack.c.l.s4 1934713408
        %v1917 = vunpack.c.0.s8 %v1916
        %v1918 = vlaneseq
        %v1919 = vshrl.u32 %v1918, 7
        %v1920 = vsub.s32 %v1917, %v1919
        %v1921 = vrot.slane %v1907, %v1920
        %v1922 = vcombine.low %v1889, %v1905
        %v1923 = vcombine.high %v1889, %v1905
        %v1925 = vunpack.c.l.s4 1934713408
        %v1926 = vunpack.c.0.s8 %v1925
        %v1927 = vlaneseq
        %v1928 = vshrl.u32 %v1927, 7
        %v1929 = vsub.s32 %v1926, %v1928
        %v1930 = vrot.slane %v1922, %v1929
        %v1932 = vunpack.c.l.s4 1934713408
        %v1933 = vunpack.c.0.s8 %v1932
        %v1934 = vlaneseq
        %v1935 = vshrl.u32 %v1934, 7
        %v1936 = vsub.s32 %v1933, %v1935
        %v1937 = vrot.slane %v1923, %v1936
        %v1938 = vcombine.high %v1914, 0.0
        %v1939 = vcombine.high %v1921, 0.0
        %v1940 = vcombine.high %v1930, 0.0
        %v1941 = vcombine.high %v1937, 0.0
        %v1942 = vcombine.low %v1914, %v1921
        %v1944 = vunpack.c.l.s4 1983009808
        %v1945 = vunpack.c.0.s8 %v1944
        %v1946 = vlaneseq
        %v1947 = vshrl.u32 %v1946, 7
        %v1948 = vsub.s32 %v1945, %v1947
        %v1949 = vrot.slane %v1942, %v1948
        %v1950 = vcombine.low %v1938, %v1939
        %v1952 = vunpack.c.l.s4 1983009808
        %v1953 = vunpack.c.0.s8 %v1952
        %v1954 = vlaneseq
        %v1955 = vshrl.u32 %v1954, 7
        %v1956 = vsub.s32 %v1953, %v1955
        %v1957 = vrot.slane %v1950, %v1956
        %v1958 = vcombine.low %v1930, %v1937
        %v1960 = vunpack.c.l.s4 1983009808
        %v1961 = vunpack.c.0.s8 %v1960
        %v1962 = vlaneseq
        %v1963 = vshrl.u32 %v1962, 7
        %v1964 = vsub.s32 %v1961, %v1963
        %v1965 = vrot.slane %v1958, %v1964
        %v1966 = vcombine.low %v1940, %v1941
        %v1968 = vunpack.c.l.s4 1983009808
        %v1969 = vunpack.c.0.s8 %v1968
        %v1970 = vlaneseq
        %v1971 = vshrl.u32 %v1970, 7
        %v1972 = vsub.s32 %v1969, %v1971
        %v1973 = vrot.slane %v1966, %v1972
        %v1974 = vcombine.low %v1949, %v1957
        %v1975 = vcombine.high %v1949, %v1957
        %v1977 = vunpack.c.l.s4 1934713408
        %v1978 = vunpack.c.0.s8 %v1977
        %v1979 = vlaneseq
        %v1980 = vshrl.u32 %v1979, 7
        %v1981 = vsub.s32 %v1978, %v1980
        %v1982 = vrot.slane %v1974, %v1981
        %v1984 = vunpack.c.l.s4 1934713408
        %v1985 = vunpack.c.0.s8 %v1984
        %v1986 = vlaneseq
        %v1987 = vshrl.u32 %v1986, 7
        %v1988 = vsub.s32 %v1985, %v1987
        %v1989 = vrot.slane %v1975, %v1988
        %v1990 = vcombine.low %v1965, %v1973
        %v1991 = vcombine.high %v1965, %v1973
        %v1993 = vunpack.c.l.s4 1934713408
        %v1994 = vunpack.c.0.s8 %v1993
        %v1995 = vlaneseq
        %v1996 = vshrl.u32 %v1995, 7
        %v1997 = vsub.s32 %v1994, %v1996
        %v1998 = vrot.slane %v1990, %v1997
        %v2000 = vunpack.c.l.s4 1934713408
        %v2001 = vunpack.c.0.s8 %v2000
        %v2002 = vlaneseq
        %v2003 = vshrl.u32 %v2002, 7
        %v2004 = vsub.s32 %v2001, %v2003
        %v2005 = vrot.slane %v1991, %v2004
        %v2006 = vcombine.low %v1982, %v1998
        %v2007 = vcombine.high %v1982, %v1998
        %v2008 = vcombine.low %v1989, %v2005
        %v2009 = vcombine.high %v1989, %v2005
        %2011 = vrot.lane.b32.xlu0 %v2007, 8
        %v2012 = vpop.permute.xlu0 %2011
        %2015 = vrot.lane.b32.xlu0 %v2008, 16
        %v2016 = vpop.permute.xlu0 %2015
        %2019 = vrot.lane.b32.xlu0 %v2009, 24
        %v2020 = vpop.permute.xlu0 %2019
        %v2022 = vsel %vm1233, %v2006, %v2012
        %vm2023 = vcmask 130048
        %v2024 = vsel %vm2023, %v2022, %v2016
        %vm2025 = vcmask 195584
        %v2026 = vsel %vm2025, %v2024, %v2020
        %v2027 = vld [vmem:[%s3] sm:$0xff]
        %v2028 = vld [vmem:[%s3 + $0x8] sm:$0xff]
        %v2029 = vld [vmem:[%s3 + $0x10] sm:$0xff]
        %v2030 = vld [vmem:[%s3 + $0x18] sm:$0xff]
        %v2031 = vld [vmem:[%s4] sm:$0x1]
        %v2033 = vlaneseq
        %v2034 = vshrl.u32 %v2033, 7
        %v2035 = vsub.s32 0, %v2034
        %v2036 = vrot.slane %v2031, %v2035
        %v2039 = vsel %vm555, %v2026, 0
        %2041 = vmatprep.subr.mxu0 0.0
        %2042 = vmatpush1.msra.mxu0 %v2027
        %2043 = vmatprep.subr.mxu0 0.0
        %2044 = vmatpush1.msra.mxu0 %v2028
        %2045 = vmatprep.subr.mxu0 0.0
        %2046 = vmatpush1.msra.mxu0 %v2029
        %2047 = vmatprep.subr.mxu0 0.0
        %2048 = vmatpush1.msra.mxu0 %v2030
        %2049 = vmatprep.subr.mxu0 0.0
        %2050 = vmatpush1.msra.mxu0 0.0
        %2051 = vmatprep.subr.mxu0 0.0
        %2052 = vmatpush1.msra.mxu0 0.0
        %2053 = vmatprep.subr.mxu0 0.0
        %2054 = vmatpush1.msra.mxu0 0.0
        %2055 = vmatprep.subr.mxu0 0.0
        %2056 = vmatpush1.msra.mxu0 0.0
        %2057 = vmatprep.subr.mxu0 0.0
        %2058 = vmatpush1.msra.mxu0 0.0
        %2059 = vmatprep.subr.mxu0 0.0
        %2060 = vmatpush1.msra.mxu0 0.0
        %2061 = vmatprep.subr.mxu0 0.0
        %2062 = vmatpush1.msra.mxu0 0.0
        %2063 = vmatprep.subr.mxu0 0.0
        %2064 = vmatpush1.msra.mxu0 0.0
        %2065 = vmatprep.subr.mxu0 0.0
        %2066 = vmatpush1.msra.mxu0 0.0
        %2067 = vmatprep.subr.mxu0 0.0
        %2068 = vmatpush1.msra.mxu0 0.0
        %2069 = vmatprep.subr.mxu0 0.0
        %2070 = vmatpush1.msra.mxu0 0.0
        %2071 = vmatprep.subr.mxu0 0.0
        %2072 = vmatpush1.msra.mxu0 0.0
        %2073 = vmatprep.subr.mxu0 0.0
        %2074 = vmatpush1.msra.mxu0 0.0
        %2075 = vmatprep.subr.mxu0 0.0
        %2076 = vmatpush1.msra.mxu0 0.0
        %2077 = vmatprep.subr.mxu0 0.0
        %2078 = vmatpush1.msra.mxu0 0.0
        %2079 = vmatprep.subr.mxu0 0.0
        %2080 = vmatpush1.msra.mxu0 0.0
        %2081 = vmatprep.subr.mxu0 0.0
        %2082 = vmatpush1.msra.mxu0 0.0
        %2083 = vmatprep.subr.mxu0 0.0
        %2084 = vmatpush1.msra.mxu0 0.0
        %2085 = vmatprep.subr.mxu0 0.0
        %2086 = vmatpush1.msra.mxu0 0.0
        %2087 = vmatprep.subr.mxu0 0.0
        %2088 = vmatpush1.msra.mxu0 0.0
        %2089 = vmatprep.subr.mxu0 0.0
        %2090 = vmatpush1.msra.mxu0 0.0
        %2091 = vmatprep.subr.mxu0 0.0
        %2092 = vmatpush1.msra.mxu0 0.0
        %2093 = vmatprep.subr.mxu0 0.0
        %2094 = vmatpush1.msra.mxu0 0.0
        %2095 = vmatprep.subr.mxu0 0.0
        %2096 = vmatpush1.msra.mxu0 0.0
        %2097 = vmatprep.subr.mxu0 0.0
        %2098 = vmatpush1.msra.mxu0 0.0
        %2099 = vmatprep.subr.mxu0 0.0
        %2100 = vmatpush1.msra.mxu0 0.0
        %2101 = vmatprep.subr.mxu0 0.0
        %2102 = vmatpush1.msra.mxu0 0.0
        %2103 = vmatprep.subr.mxu0 0.0
        %2104 = vmatpush1.msra.mxu0 0.0
        %2105 = vmatprep.mubr.f32.mxu0 0.0
        %2106 = vmatmul.mubr.f32.gmra.mrb[0].mxu0 %v2039
        %v2107 = vpop.f32.mrb[0].mxu0
        %v2108 = vadd.f32 %v2036, %v2107
        %v2109 = vpop.f32.mrb[0].mxu0
        %2110 = vdwg.mxu0
        %v2111 = vadd.f32 %v543, %v2108
        %v2112 = vld [vmem:[%s5] sm:$0x1]
        %v2113 = vld [vmem:[#allocation6] sm:$0x1]
        %v2114 = vsel %vm555, %v2111, 0.0
        %2115 = vadd.xlane.f32.xlu0 %v2114
        %v2116 = vpop.xlane.xlu0 %2115
        %v2117 = vrcp.pop 32.0
        %v2118 = vmul.f32 %v2116, %v2117
        %v2119 = vsub.f32 %v2111, %v2118
        %v2120 = vmul.f32 %v2119, %v2119
        %v2121 = vsel %vm555, %v2120, 0.0
        %2122 = vadd.xlane.f32.xlu0 %v2121
        %v2123 = vpop.xlane.xlu0 %2122
        %v2124 = vmul.f32 %v2123, %v2117
        %v2125 = vadd.f32 %v2124, 1e-05
        %v2126 = vrsqrt.pop %v2125
        %v2127 = vmul.f32 %v2119, %v2126
        %v2129 = vlaneseq
        %v2130 = vshrl.u32 %v2129, 7
        %v2131 = vsub.s32 0, %v2130
        %v2132 = vrot.slane %v2112, %v2131
        %v2134 = vmul.f32 %v2127, %v2132
        %v2136 = vlaneseq
        %v2137 = vshrl.u32 %v2136, 7
        %v2138 = vsub.s32 0, %v2137
        %v2139 = vrot.slane %v2113, %v2138
        %v2141 = vadd.f32 %v2134, %v2139
        %v2142 = vld [vmem:[%s7] sm:$0xff]
        %v2143 = vld [vmem:[%s7 + $0x8] sm:$0xff]
        %v2144 = vld [vmem:[%s7 + $0x10] sm:$0xff]
        %v2145 = vld [vmem:[%s7 + $0x18] sm:$0xff]
        %v2146 = vld [vmem:[#allocation7] sm:$0x1]
        %v2148 = vlaneseq
        %v2149 = vshrl.u32 %v2148, 7
        %v2150 = vsub.s32 0, %v2149
        %v2151 = vrot.slane %v2146, %v2150
        %v2154 = vsel %vm555, %v2141, 0
        %2156 = vmatprep.subr.mxu0 0.0
        %2157 = vmatpush1.msra.mxu0 %v2142
        %2158 = vmatprep.subr.mxu0 0.0
        %2159 = vmatpush1.msra.mxu0 %v2143
        %2160 = vmatprep.subr.mxu0 0.0
        %2161 = vmatpush1.msra.mxu0 %v2144
        %2162 = vmatprep.subr.mxu0 0.0
        %2163 = vmatpush1.msra.mxu0 %v2145
        %2164 = vmatprep.subr.mxu0 0.0
        %2165 = vmatpush1.msra.mxu0 0.0
        %2166 = vmatprep.subr.mxu0 0.0
        %2167 = vmatpush1.msra.mxu0 0.0
        %2168 = vmatprep.subr.mxu0 0.0
        %2169 = vmatpush1.msra.mxu0 0.0
        %2170 = vmatprep.subr.mxu0 0.0
        %2171 = vmatpush1.msra.mxu0 0.0
        %2172 = vmatprep.subr.mxu0 0.0
        %2173 = vmatpush1.msra.mxu0 0.0
        %2174 = vmatprep.subr.mxu0 0.0
        %2175 = vmatpush1.msra.mxu0 0.0
        %2176 = vmatprep.subr.mxu0 0.0
        %2177 = vmatpush1.msra.mxu0 0.0
        %2178 = vmatprep.subr.mxu0 0.0
        %2179 = vmatpush1.msra.mxu0 0.0
        %2180 = vmatprep.subr.mxu0 0.0
        %2181 = vmatpush1.msra.mxu0 0.0
        %2182 = vmatprep.subr.mxu0 0.0
        %2183 = vmatpush1.msra.mxu0 0.0
        %2184 = vmatprep.subr.mxu0 0.0
        %2185 = vmatpush1.msra.mxu0 0.0
        %2186 = vmatprep.subr.mxu0 0.0
        %2187 = vmatpush1.msra.mxu0 0.0
        %2188 = vmatprep.subr.mxu0 0.0
        %2189 = vmatpush1.msra.mxu0 0.0
        %2190 = vmatprep.subr.mxu0 0.0
        %2191 = vmatpush1.msra.mxu0 0.0
        %2192 = vmatprep.subr.mxu0 0.0
        %2193 = vmatpush1.msra.mxu0 0.0
        %2194 = vmatprep.subr.mxu0 0.0
        %2195 = vmatpush1.msra.mxu0 0.0
        %2196 = vmatprep.subr.mxu0 0.0
        %2197 = vmatpush1.msra.mxu0 0.0
        %2198 = vmatprep.subr.mxu0 0.0
        %2199 = vmatpush1.msra.mxu0 0.0
        %2200 = vmatprep.subr.mxu0 0.0
        %2201 = vmatpush1.msra.mxu0 0.0
        %2202 = vmatprep.subr.mxu0 0.0
        %2203 = vmatpush1.msra.mxu0 0.0
        %2204 = vmatprep.subr.mxu0 0.0
        %2205 = vmatpush1.msra.mxu0 0.0
        %2206 = vmatprep.subr.mxu0 0.0
        %2207 = vmatpush1.msra.mxu0 0.0
        %2208 = vmatprep.subr.mxu0 0.0
        %2209 = vmatpush1.msra.mxu0 0.0
        %2210 = vmatprep.subr.mxu0 0.0
        %2211 = vmatpush1.msra.mxu0 0.0
        %2212 = vmatprep.subr.mxu0 0.0
        %2213 = vmatpush1.msra.mxu0 0.0
        %2214 = vmatprep.subr.mxu0 0.0
        %2215 = vmatpush1.msra.mxu0 0.0
        %2216 = vmatprep.subr.mxu0 0.0
        %2217 = vmatpush1.msra.mxu0 0.0
        %2218 = vmatprep.subr.mxu0 0.0
        %2219 = vmatpush1.msra.mxu0 0.0
        %2220 = vmatprep.mubr.f32.mxu0 0.0
        %2221 = vmatmul.mubr.f32.gmra.mrb[0].mxu0 %v2154
        %v2222 = vpop.f32.mrb[0].mxu0
        %v2223 = vadd.f32 %v2151, %v2222
        %v2224 = vpop.f32.mrb[0].mxu0
        %2225 = vdwg.mxu0
        %v2226 = vmax.f32 %v2223, 0.0
        %v2227 = vld [vmem:[#allocation9] sm:$0xff]
        %v2228 = vld [vmem:[#allocation9 + $0x8] sm:$0xff]
        %v2229 = vld [vmem:[#allocation9 + $0x10] sm:$0xff]
        %v2230 = vld [vmem:[#allocation9 + $0x18] sm:$0xff]
        %v2231 = vld [vmem:[#allocation10] sm:$0x1]
        %v2233 = vlaneseq
        %v2234 = vshrl.u32 %v2233, 7
        %v2235 = vsub.s32 0, %v2234
        %v2236 = vrot.slane %v2231, %v2235
        %v2239 = vsel %vm555, %v2226, 0
        %2241 = vmatprep.subr.mxu0 0.0
        %2242 = vmatpush1.msra.mxu0 %v2227
        %2243 = vmatprep.subr.mxu0 0.0
        %2244 = vmatpush1.msra.mxu0 %v2228
        %2245 = vmatprep.subr.mxu0 0.0
        %2246 = vmatpush1.msra.mxu0 %v2229
        %2247 = vmatprep.subr.mxu0 0.0
        %2248 = vmatpush1.msra.mxu0 %v2230
        %2249 = vmatprep.subr.mxu0 0.0
        %2250 = vmatpush1.msra.mxu0 0.0
        %2251 = vmatprep.subr.mxu0 0.0
        %2252 = vmatpush1.msra.mxu0 0.0
        %2253 = vmatprep.subr.mxu0 0.0
        %2254 = vmatpush1.msra.mxu0 0.0
        %2255 = vmatprep.subr.mxu0 0.0
        %2256 = vmatpush1.msra.mxu0 0.0
        %2257 = vmatprep.subr.mxu0 0.0
        %2258 = vmatpush1.msra.mxu0 0.0
        %2259 = vmatprep.subr.mxu0 0.0
        %2260 = vmatpush1.msra.mxu0 0.0
        %2261 = vmatprep.subr.mxu0 0.0
        %2262 = vmatpush1.msra.mxu0 0.0
        %2263 = vmatprep.subr.mxu0 0.0
        %2264 = vmatpush1.msra.mxu0 0.0
        %2265 = vmatprep.subr.mxu0 0.0
        %2266 = vmatpush1.msra.mxu0 0.0
        %2267 = vmatprep.subr.mxu0 0.0
        %2268 = vmatpush1.msra.mxu0 0.0
        %2269 = vmatprep.subr.mxu0 0.0
        %2270 = vmatpush1.msra.mxu0 0.0
        %2271 = vmatprep.subr.mxu0 0.0
        %2272 = vmatpush1.msra.mxu0 0.0
        %2273 = vmatprep.subr.mxu0 0.0
        %2274 = vmatpush1.msra.mxu0 0.0
        %2275 = vmatprep.subr.mxu0 0.0
        %2276 = vmatpush1.msra.mxu0 0.0
        %2277 = vmatprep.subr.mxu0 0.0
        %2278 = vmatpush1.msra.mxu0 0.0
        %2279 = vmatprep.subr.mxu0 0.0
        %2280 = vmatpush1.msra.mxu0 0.0
        %2281 = vmatprep.subr.mxu0 0.0
        %2282 = vmatpush1.msra.mxu0 0.0
        %2283 = vmatprep.subr.mxu0 0.0
        %2284 = vmatpush1.msra.mxu0 0.0
        %2285 = vmatprep.subr.mxu0 0.0
        %2286 = vmatpush1.msra.mxu0 0.0
        %2287 = vmatprep.subr.mxu0 0.0
        %2288 = vmatpush1.msra.mxu0 0.0
        %2289 = vmatprep.subr.mxu0 0.0
        %2290 = vmatpush1.msra.mxu0 0.0
        %2291 = vmatprep.subr.mxu0 0.0
        %2292 = vmatpush1.msra.mxu0 0.0
        %2293 = vmatprep.subr.mxu0 0.0
        %2294 = vmatpush1.msra.mxu0 0.0
        %2295 = vmatprep.subr.mxu0 0.0
        %2296 = vmatpush1.msra.mxu0 0.0
        %2297 = vmatprep.subr.mxu0 0.0
        %2298 = vmatpush1.msra.mxu0 0.0
        %2299 = vmatprep.subr.mxu0 0.0
        %2300 = vmatpush1.msra.mxu0 0.0
        %2301 = vmatprep.subr.mxu0 0.0
        %2302 = vmatpush1.msra.mxu0 0.0
        %2303 = vmatprep.subr.mxu0 0.0
        %2304 = vmatpush1.msra.mxu0 0.0
        %2305 = vmatprep.mubr.f32.mxu0 0.0
        %2306 = vmatmul.mubr.f32.gmra.mrb[0].mxu0 %v2239
        %v2307 = vpop.f32.mrb[0].mxu0
        %v2308 = vadd.f32 %v2236, %v2307
        %v2309 = vpop.f32.mrb[0].mxu0
        %2310 = vdwg.mxu0
        %v2311 = vadd.f32 %v2141, %v2308
        %v2312 = vld [vmem:[#allocation12] sm:$0x1]
        %v2313 = vld [vmem:[#allocation13] sm:$0x1]
        %v2314 = vsel %vm555, %v2311, 0.0
        %2315 = vadd.xlane.f32.xlu0 %v2314
        %v2316 = vpop.xlane.xlu0 %2315
        %v2317 = vmul.f32 %v2316, %v2117
        %v2318 = vsub.f32 %v2311, %v2317
        %v2319 = vmul.f32 %v2318, %v2318
        %v2320 = vsel %vm555, %v2319, 0.0
        %2321 = vadd.xlane.f32.xlu0 %v2320
        %v2322 = vpop.xlane.xlu0 %2321
        %v2323 = vmul.f32 %v2322, %v2117
        %v2324 = vadd.f32 %v2323, 1e-05
        %v2325 = vrsqrt.pop %v2324
        %v2326 = vmul.f32 %v2318, %v2325
        %v2328 = vlaneseq
        %v2329 = vshrl.u32 %v2328, 7
        %v2330 = vsub.s32 0, %v2329
        %v2331 = vrot.slane %v2312, %v2330
        %v2333 = vmul.f32 %v2326, %v2331
        %v2335 = vlaneseq
        %v2336 = vshrl.u32 %v2335, 7
        %v2337 = vsub.s32 0, %v2336
        %v2338 = vrot.slane %v2313, %v2337
        %v2340 = vadd.f32 %v2333, %v2338
        %2341 = vst.msk [vmem:[%s542] sm:$0xff] %vm555, %v2340
        %p2342 = scmp.lt.s32.totalorder %s29, 1
        %s2343 = scalar_select %p2342, %s29, 1
        %s2344 = smul.addr %s2343, 8
        %s2345 = scalar_lea.vmem %s13, %s2344
        // Predicated region
        $region105: #{sab_forward.1} parent=71 // pred_check
          %p2346 = pneg %p325
        $region106: #{sab_forward.1} parent=71 // pred_check_branch
          %2348 = sbr.rel (%p2346) target = $region108
        $region107: #{sab_forward.1} parent=71 // pred_region
          _
        $region108: #{sab_forward.1} parent=71 // pred_fallthru
          _
      $region72: #{sab_forward.1} parent=5 // pred_fallthru
        _
      %p2349 = scmp.le.s32.totalorder 2, %s24
      // Predicated region
      $region109: #{sab_forward.1} parent=5 // pred_check
        %p2350 = pneg %p2349
      $region110: #{sab_forward.1} parent=5 // pred_check_branch
        %2352 = sbr.rel (%p2350) target = $region112
      $region111: #{sab_forward.1} parent=5 // pred_region
        %s2353 = ssub.s32 %s24, 2
        // Predicated region
        $region113: #{sab_forward.1} parent=111 // pred_check
          %p2354 = pneg %p331
        $region114: #{sab_forward.1} parent=111 // pred_check_branch
          %2356 = sbr.rel (%p2354) target = $region116
        $region115: #{sab_forward.1} parent=111 // pred_region
          %p2357 = scmp.lt.s32.totalorder %s30, 1
          %s2358 = scalar_select %p2357, %s30, 1
          %s2359 = smul.addr %s2358, 8
          %s2360 = scalar_lea.vmem %s13, %s2359
        $region116: #{sab_forward.1} parent=111 // pred_fallthru
          _
      $region112: #{sab_forward.1} parent=5 // pred_fallthru
        _
    $region6: #{sab_forward.1} parent=1 // loop_footer
      %s28 = sadd.s32 1, %s24
    $region7: #{sab_forward.1} parent=1 // loop_footer_branch
      %23 = sbr.rel target = $region3
    $region8: #{sab_forward.1} parent=1 // loop_exit
      _
    %2361 = vsyncpa [#allocation3], 1
    %s2362 = scalar_lea.sflag [#allocation3], 1
    %2363 = vsyncpa %s2362, 1
    %2364 = vsyncpa [#allocation5], 1
    %2365 = vsyncpa [#allocation8], 1
    %2366 = vsyncpa [#allocation11], 1
    %2367 = vsyncpa [#allocation14], 1

</llo_original>
